<compile_context>
chip_gen: v7x
topology: tpu7x:2x2x1
jax: 0.10.0
libtpu: 0.0.40
codegen_flags: <defaults>
</compile_context>

<pallas_src>
import functools

import numpy as np
import jax
import jax.numpy as jnp
from jax.experimental import pallas as pl
from jax.experimental.pallas import tpu as pltpu

BN_EPS = 1e-5
F32 = jnp.float32
BF16 = jnp.bfloat16
GROWTH = 32
NEG_BIG = -1e30            # max-pool pad marker; detected in-kernel and mapped to 0


def _detect_vmem_limit():
    try:
        cap = int(pltpu.get_tpu_info().vmem_capacity_bytes)
    except Exception:
        cap = 128 * 1024 * 1024
    return int(min(max(cap * 3 // 4, 32 * 1024 * 1024), 96 * 1024 * 1024))


_VMEM_LIMIT = _detect_vmem_limit()


def _pick_tm(hw, cap=1024):
    """Tile of the flattened-spatial axis: full extent if small, else a multiple-of-8 divisor
    (so blocks tile HW exactly)."""
    if hw <= cap:
        return hw
    for d in range(cap, 7, -8):
        if hw % d == 0:
            return d
    return hw


def _pick_div(r, cap=2048):
    """Largest divisor of r <= cap, preferring multiples of 128 (lane-dense tiles)."""
    if r <= cap:
        return r
    for d in range(cap - cap % 128, 127, -128):
        if r % d == 0:
            return d
    for d in range(cap, 0, -1):
        if r % d == 0:
            return d
    return r


def _reduce_partial(sp, s2p, c):
    """Reduce per-grid-block partial (sum, sumsq) outputs to (1, c) f32 vectors."""
    return (sp.reshape(-1, c).sum(0, keepdims=True),
            s2p.reshape(-1, c).sum(0, keepdims=True))


# ---------------------------------------------------------------------------
# Fused linear kernel:  [per-chunk BN affine + ReLU] -> sum_g concat(chunk_g) @ W_g (+bias)
# Consecutive chunks are grouped so each MXU dot runs at K<=256 (full MXU depth on v6e/v7x).
# Optionally emits per-grid-block partial per-channel sum / sum-of-squares of the output
# (reduced at JAX level) so downstream BatchNorm batch statistics stay exact while both grid
# axes remain "parallel" (v7x megacore).
# Used for: stem conv (via im2col), dense-layer bottleneck 1x1, transitions, deconv heads.
# ---------------------------------------------------------------------------
@functools.lru_cache(maxsize=None)
def _build_linear(n, hw, tm, chunk_dims, nout, has_affine, has_bias, emit_stats,
                  out_dtype_name):
    out_dtype = jnp.dtype(out_dtype_name)
    nchunks = len(chunk_dims)
    k_off = tuple(int(x) for x in np.concatenate([[0], np.cumsum(chunk_dims)]))
    ktot = k_off[-1]
    nblk = hw // tm

    # Group consecutive chunks up to K=256 per dot (chunks wider than 256 stay alone).
    groups, cur, cur_k = [], [], 0
    for j, c in enumerate(chunk_dims):
        if cur and cur_k + c > 256:
            groups.append(tuple(cur))
            cur, cur_k = [], 0
        cur.append(j)
        cur_k += c
    if cur:
        groups.append(tuple(cur))
    groups = tuple(groups)

    def kernel(*refs):
        i = nchunks
        ch_refs = refs[:nchunks]
        aff_refs = None
        if has_affine:
            aff_refs = refs[i:i + 2 * nchunks]
            i += 2 * nchunks
        w_ref = refs[i]; i += 1
        b_ref = None
        if has_bias:
            b_ref = refs[i]; i += 1
        y_ref = refs[i]; i += 1
        if emit_stats:
            s_ref, s2_ref = refs[i], refs[i + 1]

        def loaded(j):
            x = ch_refs[j][0]                                   # (tm, C_j) bf16
            if has_affine:
                xf = x.astype(F32) * aff_refs[2 * j][...] + aff_refs[2 * j + 1][...]
                x = jnp.maximum(xf, 0.0).astype(BF16)
            return x

        acc = None
        for g in groups:
            xs = [loaded(j) for j in g]
            xg = xs[0] if len(xs) == 1 else jnp.concatenate(xs, axis=-1)
            wg = w_ref[k_off[g[0]]:k_off[g[-1] + 1], :]
            part = jnp.dot(xg, wg, preferred_element_type=F32)
            acc = part if acc is None else acc + part
        if has_bias:
            acc = acc + b_ref[...]
        y = acc.astype(out_dtype)
        y_ref[0] = y

        if emit_stats:
            yf = y.astype(F32)
            s_ref[0, 0] = jnp.sum(yf, axis=0, keepdims=True)
            s2_ref[0, 0] = jnp.sum(yf * yf, axis=0, keepdims=True)

    in_specs = [pl.BlockSpec((1, tm, c), lambda ni, mi: (ni, mi, 0))
                for c in chunk_dims]
    if has_affine:
        for c in chunk_dims:
            in_specs += [pl.BlockSpec((1, c), lambda ni, mi: (0, 0))] * 2
    in_specs += [pl.BlockSpec((ktot, nout), lambda ni, mi: (0, 0))]
    if has_bias:
        in_specs += [pl.BlockSpec((1, nout), lambda ni, mi: (0, 0))]

    out_shape = [jax.ShapeDtypeStruct((n, hw, nout), out_dtype)]
    out_specs = [pl.BlockSpec((1, tm, nout), lambda ni, mi: (ni, mi, 0))]
    if emit_stats:
        out_shape += [jax.ShapeDtypeStruct((n, nblk, 1, nout), F32)] * 2
        out_specs += [pl.BlockSpec((1, 1, 1, nout), lambda ni, mi: (ni, mi, 0, 0))] * 2

    return pl.pallas_call(
        kernel,
        grid=(n, nblk),
        in_specs=in_specs,
        out_specs=tuple(out_specs),
        out_shape=tuple(out_shape),
        compiler_params=pltpu.CompilerParams(
            dimension_semantics=("parallel", "parallel"),
            vmem_limit_bytes=_VMEM_LIMIT),
    )


def linear_apply(chunks, w, *, scale=None, shift=None, bias=None,
                 emit_stats=False, out_dtype=BF16):
    n, hw, _ = chunks[0].shape
    chunk_dims = tuple(int(c.shape[-1]) for c in chunks)
    nout = int(w.shape[-1])
    tm = _pick_tm(hw)
    fn = _build_linear(n, hw, tm, chunk_dims, nout, scale is not None,
                       bias is not None, emit_stats, jnp.dtype(out_dtype).name)
    args = list(chunks)
    if scale is not None:
        scale = scale.astype(F32)
        shift = shift.astype(F32)
        k0 = 0
        for c in chunk_dims:
            args += [scale[k0:k0 + c].reshape(1, c), shift[k0:k0 + c].reshape(1, c)]
            k0 += c
    args.append(w)
    if bias is not None:
        args.append(bias.reshape(1, nout).astype(F32))
    res = fn(*args)
    if not emit_stats:
        return res[0]
    y, sp, s2p = res
    s, s2 = _reduce_partial(sp, s2p, nout)
    return y, s, s2


# ---------------------------------------------------------------------------
# Dense-layer 3x3 conv kernel: BN2 affine + ReLU on the bottleneck, 3x3 conv from a halo'd VMEM
# scratch with taps paired along K (4 x K=2*cmid + 1 x K=cmid dots), result written lane-dense
# into a 128-wide channel chunk (weights padded with zero columns at the layer offset).
# Emits per-batch partial channel sum / sum-of-squares; grid axis is "parallel".
# TODO(synk): strip-tile H with a 1-row halo for large images (full-plane blocks here).
# ---------------------------------------------------------------------------
@functools.lru_cache(maxsize=None)
def _build_conv3x3_chunk(n, h, w, cmid, cchunk):
    hw = h * w
    pairs = ((0, 2), (2, 4), (4, 6), (6, 8), (8, 9))

    def kernel(bott_ref, sc_ref, sh_ref, w_ref, old_ref, out_ref, s_ref, s2_ref,
               pad_ref):
        sc = sc_ref[...].reshape(1, 1, cmid)
        sh = sh_ref[...].reshape(1, 1, cmid)
        x = jnp.maximum(bott_ref[0].astype(F32) * sc + sh, 0.0).astype(BF16)
        # Zero only the 1-wide halo border; the interior is fully overwritten below.
        pad_ref[0:1, :, :] = jnp.zeros((1, w + 2, cmid), BF16)
        pad_ref[h + 1:h + 2, :, :] = jnp.zeros((1, w + 2, cmid), BF16)
        pad_ref[:, 0:1, :] = jnp.zeros((h + 2, 1, cmid), BF16)
        pad_ref[:, w + 1:w + 2, :] = jnp.zeros((h + 2, 1, cmid), BF16)
        pad_ref[1:h + 1, 1:w + 1, :] = x

        def tap(t):
            ky, kx = t // 3, t % 3
            return pad_ref[ky:ky + h, kx:kx + w, :].reshape(hw, cmid)

        acc = None
        for a, b in pairs:
            xs = [tap(t) for t in range(a, b)]
            xg = xs[0] if len(xs) == 1 else jnp.concatenate(xs, axis=-1)
            wg = w_ref[a * cmid:b * cmid, :]
            part = jnp.dot(xg, wg, preferred_element_type=F32)
            acc = part if acc is None else acc + part

        # target 32 columns of the chunk are still zero, so old + acc only fills them in.
        out_ref[0] = (old_ref[0].astype(F32) + acc).astype(BF16)

        nf = acc.astype(BF16).astype(F32)     # stored new-feature values; exact 0 elsewhere
        s_ref[0] = jnp.sum(nf, axis=0, keepdims=True)
        s2_ref[0] = jnp.sum(nf * nf, axis=0, keepdims=True)

    return pl.pallas_call(
        kernel,
        grid=(n,),
        in_specs=[
            pl.BlockSpec((1, h, w, cmid), lambda ni: (ni, 0, 0, 0)),
            pl.BlockSpec((1, cmid), lambda ni: (0, 0)),
            pl.BlockSpec((1, cmid), lambda ni: (0, 0)),
            pl.BlockSpec((9 * cmid, cchunk), lambda ni: (0, 0)),
            pl.BlockSpec((1, hw, cchunk), lambda ni: (ni, 0, 0)),
        ],
        out_specs=(
            pl.BlockSpec((1, hw, cchunk), lambda ni: (ni, 0, 0)),
            pl.BlockSpec((1, 1, cchunk), lambda ni: (ni, 0, 0)),
            pl.BlockSpec((1, 1, cchunk), lambda ni: (ni, 0, 0)),
        ),
        out_shape=(
            jax.ShapeDtypeStruct((n, hw, cchunk), BF16),
            jax.ShapeDtypeStruct((n, 1, cchunk), F32),
            jax.ShapeDtypeStruct((n, 1, cchunk), F32),
        ),
        scratch_shapes=[pltpu.VMEM((h + 2, w + 2, cmid), BF16)],
        compiler_params=pltpu.CompilerParams(dimension_semantics=("parallel",),
                                             vmem_limit_bytes=_VMEM_LIMIT),
    )


def conv3x3_into_chunk(bott4, scale2, shift2, w2p, old_chunk):
    n, h, w, cmid = bott4.shape
    cchunk = int(old_chunk.shape[-1])
    fn = _build_conv3x3_chunk(n, h, w, cmid, cchunk)
    new_chunk, sp, s2p = fn(bott4, scale2.reshape(1, cmid).astype(F32),
                            shift2.reshape(1, cmid).astype(F32), w2p, old_chunk)
    s, s2 = _reduce_partial(sp, s2p, cchunk)
    return new_chunk, s, s2


# ---------------------------------------------------------------------------
# Pooling kernels (single pass over disjoint even/odd phase sub-grids), emitting per-batch
# partial channel stats of the pooled output. Max-pool fuses BN0 affine+ReLU; padded taps are
# detected in-kernel and mapped to 0 (post-ReLU floor) so they can never win the max regardless
# of the folded BN scale's sign.
# TODO(synk): the even/odd phase slices are still materialized at JAX level; an in-kernel
# windowed read would save one extra HBM pass over the largest activation.
# ---------------------------------------------------------------------------
@functools.lru_cache(maxsize=None)
def _build_maxpool_bn(n, oh, ow, c):
    def kernel(p00, p01, p10, p11, sc_ref, sh_ref, out_ref, s_ref, s2_ref):
        sc = sc_ref[...].reshape(1, 1, c)
        sh = sh_ref[...].reshape(1, 1, c)
        ph = []
        for p in (p00, p01, p10, p11):
            raw = p[0].astype(F32)
            val = jnp.maximum(raw * sc + sh, 0.0)
            ph.append(jnp.where(raw > NEG_BIG * 0.5, val, 0.0))
        m = None
        for ky in range(3):
            for kx in range(3):
                t = ph[(ky % 2) * 2 + (kx % 2)][ky // 2:ky // 2 + oh,
                                                kx // 2:kx // 2 + ow, :]
                m = t if m is None else jnp.maximum(m, t)
        mb = m.astype(BF16)
        out_ref[0] = mb
        mf = mb.astype(F32)
        s_ref[0] = jnp.sum(mf, axis=(0, 1)).reshape(1, c)
        s2_ref[0] = jnp.sum(mf * mf, axis=(0, 1)).reshape(1, c)

    return pl.pallas_call(
        kernel,
        grid=(n,),
        in_specs=[pl.BlockSpec((1, oh + 1, ow + 1, c), lambda ni: (ni, 0, 0, 0))] * 4
                 + [pl.BlockSpec((1, c), lambda ni: (0, 0))] * 2,
        out_specs=(pl.BlockSpec((1, oh, ow, c), lambda ni: (ni, 0, 0, 0)),
                   pl.BlockSpec((1, 1, c), lambda ni: (ni, 0, 0)),
                   pl.BlockSpec((1, 1, c), lambda ni: (ni, 0, 0))),
        out_shape=(jax.ShapeDtypeStruct((n, oh, ow, c), BF16),
                   jax.ShapeDtypeStruct((n, 1, c), F32),
                   jax.ShapeDtypeStruct((n, 1, c), F32)),
        compiler_params=pltpu.CompilerParams(dimension_semantics=("parallel",),
                                             vmem_limit_bytes=_VMEM_LIMIT),
    )


def maxpool_bn(conv_raw4, scale0, shift0):
    n, h, w, c = conv_raw4.shape
    assert h % 2 == 0 and w % 2 == 0
    xp = jnp.pad(conv_raw4, ((0, 0), (1, 1), (1, 1), (0, 0)),
                 constant_values=NEG_BIG)
    phases = [xp[:, py::2, px::2, :] for py in (0, 1) for px in (0, 1)]
    out, sp, s2p = _build_maxpool_bn(n, h // 2, w // 2, c)(
        *phases, scale0.reshape(1, c).astype(F32), shift0.reshape(1, c).astype(F32))
    s, s2 = _reduce_partial(sp, s2p, c)
    return out, s, s2


@functools.lru_cache(maxsize=None)
def _build_avgpool(n, oh, ow, c):
    def kernel(p00, p01, p10, p11, out_ref, s_ref, s2_ref):
        m = (p00[0].astype(F32) + p01[0].astype(F32)
             + p10[0].astype(F32) + p11[0].astype(F32)) * 0.25
        mb = m.astype(BF16)
        out_ref[0] = mb
        mf = mb.astype(F32)
        s_ref[0] = jnp.sum(mf, axis=(0, 1)).reshape(1, c)
        s2_ref[0] = jnp.sum(mf * mf, axis=(0, 1)).reshape(1, c)

    return pl.pallas_call(
        kernel,
        grid=(n,),
        in_specs=[pl.BlockSpec((1, oh, ow, c), lambda ni: (ni, 0, 0, 0))] * 4,
        out_specs=(pl.BlockSpec((1, oh, ow, c), lambda ni: (ni, 0, 0, 0)),
                   pl.BlockSpec((1, 1, c), lambda ni: (ni, 0, 0)),
                   pl.BlockSpec((1, 1, c), lambda ni: (ni, 0, 0))),
        out_shape=(jax.ShapeDtypeStruct((n, oh, ow, c), BF16),
                   jax.ShapeDtypeStruct((n, 1, c), F32),
                   jax.ShapeDtypeStruct((n, 1, c), F32)),
        compiler_params=pltpu.CompilerParams(dimension_semantics=("parallel",),
                                             vmem_limit_bytes=_VMEM_LIMIT),
    )


def avgpool_stats(x4):
    n, h, w, c = x4.shape
    assert h % 2 == 0 and w % 2 == 0
    phases = [x4[:, py::2, px::2, :] for py in (0, 1) for px in (0, 1)]
    out, sp, s2p = _build_avgpool(n, h // 2, w // 2, c)(*phases)
    s, s2 = _reduce_partial(sp, s2p, c)
    return out, s, s2


# ---------------------------------------------------------------------------
# Small batched left-matmul (A @ X[n]) used for the separable bilinear upsample (tiled along the
# free column axis), and the fused N-way sum of the folded deconv-head contributions.
# ---------------------------------------------------------------------------
@functools.lru_cache(maxsize=None)
def _build_left_matmul(n, p, q, r, tr):
    def kernel(a_ref, x_ref, o_ref):
        o_ref[0] = jnp.dot(a_ref[...], x_ref[0], preferred_element_type=F32)

    return pl.pallas_call(
        kernel,
        grid=(n, r // tr),
        in_specs=[pl.BlockSpec((p, q), lambda ni, ci: (0, 0)),
                  pl.BlockSpec((1, q, tr), lambda ni, ci: (ni, 0, ci))],
        out_specs=pl.BlockSpec((1, p, tr), lambda ni, ci: (ni, 0, ci)),
        out_shape=jax.ShapeDtypeStruct((n, p, r), F32),
        compiler_params=pltpu.CompilerParams(
            dimension_semantics=("parallel", "parallel"),
            vmem_limit_bytes=_VMEM_LIMIT),
    )


def left_matmul(a, x):
    n, q, r = x.shape
    tr = _pick_div(r)
    return _build_left_matmul(n, int(a.shape[0]), q, r, tr)(a.astype(F32),
                                                            x.astype(F32))


@functools.lru_cache(maxsize=None)
def _build_sum(narr, n, h, w, c, th):
    def kernel(*refs):
        o_ref = refs[-1]
        acc = refs[0][...]
        for r in refs[1:narr]:
            acc = acc + r[...]
        o_ref[...] = acc

    spec = pl.BlockSpec((1, th, w, c), lambda ni, hi: (ni, hi, 0, 0))
    return pl.pallas_call(
        kernel,
        grid=(n, h // th),
        in_specs=[spec] * narr,
        out_specs=spec,
        out_shape=jax.ShapeDtypeStruct((n, h, w, c), F32),
        compiler_params=pltpu.CompilerParams(
            dimension_semantics=("parallel", "parallel")),
    )


def sum_heads(*arrs):
    n, h, w, c = arrs[0].shape
    th = _pick_tm(h, cap=128)
    return _build_sum(len(arrs), n, h, w, c, th)(*arrs)


# ---------------------------------------------------------------------------
# Deconv head: folded 1x1 conv(s) then separable align_corners bilinear upsampling
# (W-axis first so the full-resolution result needs no transpose). Matches
# nn.UpsamplingBilinear2d semantics.
# ---------------------------------------------------------------------------
@functools.lru_cache(maxsize=None)
def _bilinear_matrix(in_size, out_size):
    a = np.zeros((out_size, in_size), dtype=np.float32)
    if in_size == 1:
        a[:, 0] = 1.0
    else:
        for i in range(out_size):
            pos = i * (in_size - 1) / (out_size - 1)
            lo = int(np.floor(pos))
            hi = min(lo + 1, in_size - 1)
            f = pos - lo
            a[i, lo] += 1.0 - f
            a[i, hi] += f
    return jnp.asarray(a)


def head_upsample(chunks, h, w, wf, hout, wout, scale_pre=None, shift_pre=None):
    n = chunks[0].shape[0]
    k = int(wf.shape[-1])
    y = linear_apply(chunks, wf, scale=scale_pre, shift=shift_pre, out_dtype=F32)
    # W-axis upsample first (transpose happens at the small source resolution),
    # then H-axis, so the full-resolution output is already in (n, hout, wout, k) layout.
    y = y.reshape(n, h, w, k).transpose(0, 2, 1, 3).reshape(n, w, h * k)
    z = left_matmul(_bilinear_matrix(w, wout), y)                     # (n, wout, h*k)
    z = z.reshape(n, wout, h, k).transpose(0, 2, 1, 3).reshape(n, h, wout * k)
    u = left_matmul(_bilinear_matrix(h, hout), z)                     # (n, hout, wout*k)
    return u.reshape(n, hout, wout, k)


# ---------------------------------------------------------------------------
# Glue helpers.
# ---------------------------------------------------------------------------
def im2col(x, kh, kw, stride, pad):
    # TODO(synk): conv0 / deconv0 still use a JAX-level im2col of the 3-channel input; a direct
    # in-kernel 7x7 / 3x3 conv would remove this remaining patch expansion.
    n, h, w, c = x.shape
    oh = (h + 2 * pad - kh) // stride + 1
    ow = (w + 2 * pad - kw) // stride + 1
    xp = jnp.pad(x, ((0, 0), (pad, pad), (pad, pad), (0, 0)))
    cols = [xp[:, ky:ky + stride * oh:stride, kx:kx + stride * ow:stride, :]
            for ky in range(kh) for kx in range(kw)]
    patches = jnp.concatenate(cols, axis=-1)
    return patches.reshape(n, oh * ow, kh * kw * c), oh, ow


def bn_affine(s, s2, count, gamma, beta):
    # TODO(synk): one-pass (sum, sumsq) variance on bf16-rounded activations; verify against a
    # two-pass f32 reference at production resolutions.
    s = s.reshape(-1)
    s2 = s2.reshape(-1)
    mean = s / count
    var = jnp.maximum(s2 / count - mean * mean, 0.0)
    scale = gamma * jax.lax.rsqrt(var + BN_EPS)
    shift = beta - mean * scale
    return scale, shift


def _pad_vec(v, k):
    c = int(v.shape[0])
    return v if k == c else jnp.concatenate([v, jnp.zeros((k - c,), v.dtype)])


def _pad_rows(w, k):
    c = int(w.shape[0])
    return w if k == c else jnp.concatenate(
        [w, jnp.zeros((k - c, w.shape[1]), w.dtype)], axis=0)


# ---------------------------------------------------------------------------
# DenseNet building blocks.
# ---------------------------------------------------------------------------
def run_dense_block(chunk0, chunk0_stats, layer_params, n, h, w):
    hw = h * w
    count = float(n * hw)
    chunks = [chunk0]
    stats = [chunk0_stats]                 # per chunk: (sum, sumsq), each (1, C)
    c0 = int(chunk0.shape[-1])

    for li, p in enumerate(layer_params):
        ngrow_in = -(-(li * GROWTH) // 128)
        in_chunks = chunks[:1 + ngrow_in]
        k_pad = c0 + ngrow_in * 128

        s_cat = jnp.concatenate([st[0] for st in stats[:1 + ngrow_in]], axis=1)
        s2_cat = jnp.concatenate([st[1] for st in stats[:1 + ngrow_in]], axis=1)
        scale1, shift1 = bn_affine(s_cat, s2_cat, count,
                                   _pad_vec(p['g1'], k_pad),
                                   _pad_vec(p['b1'], k_pad))
        w1p = _pad_rows(p['w1'], k_pad)
        bott, bs, bs2 = linear_apply(in_chunks, w1p, scale=scale1, shift=shift1,
                                     emit_stats=True)
        scale2, shift2 = bn_affine(bs, bs2, count, p['g2'], p['b2'])

        gi = 1 + (li * GROWTH) // 128
        if gi >= len(chunks):
            chunks.append(jnp.zeros((n, hw, 128), BF16))
            stats.append((jnp.zeros((1, 128), F32), jnp.zeros((1, 128), F32)))
        off = (li * GROWTH) % 128
        w2p = jnp.zeros((p['w2'].shape[0], 128), BF16).at[:, off:off + GROWTH].set(p['w2'])
        new_chunk, ns, ns2 = conv3x3_into_chunk(bott.reshape(n, h, w, 128),
                                                scale2, shift2, w2p, chunks[gi])
        chunks[gi] = new_chunk
        stats[gi] = (stats[gi][0] + ns, stats[gi][1] + ns2)
        # drop_rate == 0 -> dropout is the identity

    return chunks, stats


def run_transition(chunks, stats, count, p):
    k_tot = int(sum(int(c.shape[-1]) for c in chunks))
    s_cat = jnp.concatenate([st[0] for st in stats], axis=1)
    s2_cat = jnp.concatenate([st[1] for st in stats], axis=1)
    scale, shift = bn_affine(s_cat, s2_cat, count,
                             _pad_vec(p['g'], k_tot), _pad_vec(p['b'], k_tot))
    return linear_apply(chunks, _pad_rows(p['w'], k_tot), scale=scale, shift=shift)


# ---------------------------------------------------------------------------
# Full forward pass.
# ---------------------------------------------------------------------------
def densenet_forward(x_nchw, params):
    x = jnp.transpose(x_nchw, (0, 2, 3, 1)).astype(F32)        # NCHW -> NHWC
    n, h0, w0, _ = x.shape

    # --- stem: conv0 (7x7, s2, p3, no bias) as a tiled Pallas matmul + channel stats.
    patches, h1, w1 = im2col(x.astype(BF16), 7, 7, 2, 3)
    conv0_raw, s0, s02 = linear_apply([patches], params['conv0_w'], emit_stats=True)
    scale0, shift0 = bn_affine(s0, s02, float(n * h1 * w1),
                               params['bn0_g'], params['bn0_b'])

    # --- pool0: BN0 + ReLU fused into the 3x3/s2/p1 max-pool kernel (+ pooled stats).
    pooled4, sp, sp2 = maxpool_bn(conv0_raw.reshape(n, h1, w1, 64), scale0, shift0)
    h2, w2 = h1 // 2, w1 // 2
    pooled = pooled4.reshape(n, h2 * w2, 64)

    # --- dense block 1 + transition1
    chunks, stats = run_dense_block(pooled, (sp, sp2), params['block1'], n, h2, w2)
    x_conct3 = run_transition(chunks, stats, float(n * h2 * w2), params['trans1'])
    t1p4, t1s, t1s2 = avgpool_stats(x_conct3.reshape(n, h2, w2, x_conct3.shape[-1]))
    h3, w3 = h2 // 2, w2 // 2
    t1p = t1p4.reshape(n, h3 * w3, -1)

    # --- dense block 2 + transition2
    chunks, stats = run_dense_block(t1p, (t1s, t1s2), params['block2'], n, h3, w3)
    x_conct4 = run_transition(chunks, stats, float(n * h3 * w3), params['trans2'])
    t2p4, t2s, t2s2 = avgpool_stats(x_conct4.reshape(n, h3, w3, x_conct4.shape[-1]))
    h4, w4 = h3 // 2, w3 // 2
    t2p = t2p4.reshape(n, h4 * w4, -1)

    # --- dense block 3 + transition3
    chunks, stats = run_dense_block(t2p, (t2s, t2s2), params['block3'], n, h4, w4)
    x_conct5 = run_transition(chunks, stats, float(n * h4 * w4), params['trans3'])

    # --- deconv heads + conv_class (all linear after the backbone): fold each head's 1x1 conv /
    #     deconv0 with its 9-column classifier slice; biases folded into one constant; heads 2+3
    #     (same source resolution, summed anyway) share one linear + one separable upsample;
    #     single fused 5-way sum.
    wc = params['conv_class_w'].astype(F32)
    wcs = [wc[9 * i:9 * (i + 1), :] for i in range(6)]
    b_total = params['conv_class_b'].astype(F32)
    for i in range(1, 6):
        b_total = b_total + params['deconv%d_b' % i].astype(F32) @ wcs[i]
    w0f = (params['deconv0_w'].astype(F32) @ wcs[0]).astype(BF16)
    wf = {i: (params['deconv%d_w' % i].astype(F32) @ wcs[i]).astype(BF16)
          for i in range(1, 6)}

    d0_patches, _, _ = im2col(x.astype(BF16), 3, 3, 1, 1)
    d0 = linear_apply([d0_patches], w0f, bias=b_total,
                      out_dtype=F32).reshape(n, h0, w0, 9)
    d1 = head_upsample([conv0_raw], h1, w1, wf[1], h0, w0,
                       scale_pre=scale0, shift_pre=shift0)
    w23 = jnp.concatenate([wf[2], wf[3]], axis=0)
    d23 = head_upsample([pooled, x_conct3], h2, w2, w23, h0, w0)
    d4 = head_upsample([x_conct4], h3, w3, wf[4], h0, w0)
    d5 = head_upsample([x_conct5], h4, w4, wf[5], h0, w0)

    out = sum_heads(d0, d1, d23, d4, d5)            # (n, h0, w0, 9) f32
    return jnp.transpose(out, (0, 3, 1, 2))         # NHWC -> NCHW


# ---------------------------------------------------------------------------
# Deterministic parameter initialization (kaiming-normal convs, BN gamma=1/beta=0).
# Conv weights are stored in matmul layout: (kh*kw*Cin, Cout) / (Cin, Cout);
# backbone conv weights are kept in bf16 for the MXU.
# ---------------------------------------------------------------------------
def init_params(key, growth_rate=32, block_config=(6, 12, 32),
                num_init_features=64, bn_size=4, num_classes=9):
    keys = iter(jax.random.split(key, 512))

    def kaiming(shape, fan_in, dtype=BF16):
        return (jax.random.normal(next(keys), shape, F32)
                * np.sqrt(2.0 / fan_in)).astype(dtype)

    def uniform(shape, bound):
        return jax.random.uniform(next(keys), shape, F32, -bound, bound)

    p = {}
    p['conv0_w'] = kaiming((7 * 7 * 3, num_init_features), 7 * 7 * 3)
    p['bn0_g'] = jnp.ones((num_init_features,), F32)
    p['bn0_b'] = jnp.zeros((num_init_features,), F32)

    num_features = num_init_features
    for bi, num_layers in enumerate(block_config):
        layers = []
        for li in range(num_layers):
            cin = num_features + li * growth_rate
            cmid = bn_size * growth_rate
            layers.append(dict(
                g1=jnp.ones((cin,), F32), b1=jnp.zeros((cin,), F32),
                w1=kaiming((cin, cmid), cin),
                g2=jnp.ones((cmid,), F32), b2=jnp.zeros((cmid,), F32),
                w2=kaiming((3 * 3 * cmid, growth_rate), 3 * 3 * cmid),
            ))
        p['block%d' % (bi + 1)] = layers
        num_features = num_features + num_layers * growth_rate
        cout = num_features // 2
        p['trans%d' % (bi + 1)] = dict(
            g=jnp.ones((num_features,), F32),
            b=jnp.zeros((num_features,), F32),
            w=kaiming((num_features, cout), num_features))
        num_features = cout

    p['deconv0_w'] = kaiming((3 * 3 * 3, num_classes), 3 * 3 * 3, F32)
    head_cins = {1: 64, 2: 64, 3: 128, 4: 256, 5: 640}
    for i, cin in head_cins.items():
        p['deconv%d_w' % i] = kaiming((cin, num_classes), cin, F32)
        p['deconv%d_b' % i] = uniform((num_classes,), 1.0 / np.sqrt(cin))
    p['conv_class_w'] = kaiming((num_classes * 6, num_classes),
                                num_classes * 6, F32)
    p['conv_class_b'] = uniform((num_classes,), 1.0 / np.sqrt(num_classes * 6))
    return p


if __name__ == "__main__":
    key = jax.random.PRNGKey(0)
    pkey, xkey = jax.random.split(key)
    params = init_params(pkey)
    x = jax.random.normal(xkey, (2, 3, 32, 32), F32)   # NCHW, like the PyTorch module
    out = densenet_forward(x, params)
    out = jax.block_until_ready(out)
    assert out.shape == (2, 9, 32, 32), out.shape
    assert bool(jnp.all(jnp.isfinite(out)))
    print("KERNEL_OK")
</pallas_src>

<mosaic_0001>
module attributes {stable_mosaic.version = 11 : i64} {
  func.func @kernel(%arg0: i32, %arg1: i32, %arg2: memref<1x256x147xbf16, #tpu.memory_space<vmem>>, %arg3: memref<147x64xbf16, #tpu.memory_space<vmem>>, %arg4: memref<1x256x64xbf16, #tpu.memory_space<vmem>>, %arg5: memref<1x1x1x64xf32, #tpu.memory_space<vmem>>, %arg6: memref<1x1x1x64xf32, #tpu.memory_space<vmem>>) attributes {dimension_semantics = [#tpu.dimension_semantics<parallel>, #tpu.dimension_semantics<parallel>], iteration_bounds = array<i64: 2, 1>, scalar_prefetch = 0 : i64, scratch_operands = 0 : i64, tpu.core_type = #tpu.core_type<tc>, window_params = [{transform_indices = @transform_0, window_bounds = array<i64: 1, 256, 147>}, {pipeline_mode = #tpu.pipeline_mode<synchronous>, transform_indices = @transform_1, window_bounds = array<i64: 147, 64>}, {transform_indices = @transform_2, window_bounds = array<i64: 1, 256, 64>}, {transform_indices = @transform_3, window_bounds = array<i64: 1, 1, 1, 64>}, {transform_indices = @transform_4, window_bounds = array<i64: 1, 1, 1, 64>}]} {
    %c0 = arith.constant 0 : index
    %c0_0 = arith.constant 0 : index
    %c0_1 = arith.constant 0 : index
    %0 = vector.load %arg2[%c0, %c0_0, %c0_1] : memref<1x256x147xbf16, #tpu.memory_space<vmem>>, vector<1x256x147xbf16>
    %1 = vector.shape_cast %0 : vector<1x256x147xbf16> to vector<256x147xbf16>
    %c0_2 = arith.constant 0 : index
    %c0_3 = arith.constant 0 : index
    %2 = vector.load %arg3[%c0_2, %c0_3] : memref<147x64xbf16, #tpu.memory_space<vmem>>, vector<147x64xbf16>
    %cst = arith.constant dense<0.000000e+00> : vector<256x64xf32>
    %3 = tpu.matmul %1, %2, %cst {dimension_numbers = #tpu.dot_dimension_numbers<[1], [0], [0], [1], [0, 0, 1, 1], [], []>} : vector<256x147xbf16>, vector<147x64xbf16>, vector<256x64xf32> -> vector<256x64xf32>
    %4 = arith.truncf %3 : vector<256x64xf32> to vector<256x64xbf16>
    %c0_4 = arith.constant 0 : index
    %c0_5 = arith.constant 0 : index
    %c0_6 = arith.constant 0 : index
    %5 = vector.load %arg4[%c0_4, %c0_5, %c0_6] : memref<1x256x64xbf16, #tpu.memory_space<vmem>>, vector<1x256x64xbf16>
    %6 = vector.shape_cast %5 : vector<1x256x64xbf16> to vector<256x64xbf16>
    %7 = vector.shape_cast %4 : vector<256x64xbf16> to vector<1x256x64xbf16>
    tpu.vector_store %arg4[%c0_4, %c0_5, %c0_6], %7 {strides = array<i32>} : memref<1x256x64xbf16, #tpu.memory_space<vmem>>, vector<1x256x64xbf16>,
    %8 = arith.extf %4 : vector<256x64xbf16> to vector<256x64xf32>
    %cst_7 = arith.constant dense<0.000000e+00> : vector<64xf32>
    %9 = vector.multi_reduction <add>, %8, %cst_7 [0] : vector<256x64xf32> to vector<64xf32>
    %10 = vector.shape_cast %9 : vector<64xf32> to vector<1x64xf32>
    %c0_8 = arith.constant 0 : index
    %c0_9 = arith.constant 0 : index
    %c0_10 = arith.constant 0 : index
    %c0_11 = arith.constant 0 : index
    %11 = vector.load %arg5[%c0_8, %c0_9, %c0_10, %c0_11] : memref<1x1x1x64xf32, #tpu.memory_space<vmem>>, vector<1x1x1x64xf32>
    %12 = vector.shape_cast %11 : vector<1x1x1x64xf32> to vector<1x64xf32>
    %13 = vector.shape_cast %10 : vector<1x64xf32> to vector<1x1x1x64xf32>
    tpu.vector_store %arg5[%c0_8, %c0_9, %c0_10, %c0_11], %13 {strides = array<i32>} : memref<1x1x1x64xf32, #tpu.memory_space<vmem>>, vector<1x1x1x64xf32>,
    %14 = arith.mulf %8, %8 : vector<256x64xf32>
    %cst_12 = arith.constant dense<0.000000e+00> : vector<64xf32>
    %15 = vector.multi_reduction <add>, %14, %cst_12 [0] : vector<256x64xf32> to vector<64xf32>
    %16 = vector.shape_cast %15 : vector<64xf32> to vector<1x64xf32>
    %c0_13 = arith.constant 0 : index
    %c0_14 = arith.constant 0 : index
    %c0_15 = arith.constant 0 : index
    %c0_16 = arith.constant 0 : index
    %17 = vector.load %arg6[%c0_13, %c0_14, %c0_15, %c0_16] : memref<1x1x1x64xf32, #tpu.memory_space<vmem>>, vector<1x1x1x64xf32>
    %18 = vector.shape_cast %17 : vector<1x1x1x64xf32> to vector<1x64xf32>
    %19 = vector.shape_cast %16 : vector<1x64xf32> to vector<1x1x1x64xf32>
    tpu.vector_store %arg6[%c0_13, %c0_14, %c0_15, %c0_16], %19 {strides = array<i32>} : memref<1x1x1x64xf32, #tpu.memory_space<vmem>>, vector<1x1x1x64xf32>,
    return
  }
  func.func @transform_0(%arg0: i32, %arg1: i32) -> (i32, i32, i32) {
    %c0_i32 = arith.constant 0 : i32
    %c0_i32_0 = arith.constant 0 : i32
    return %arg0, %arg1, %c0_i32 : i32, i32, i32
  }
  func.func @transform_1(%arg0: i32, %arg1: i32) -> (i32, i32) {
    %c0_i32 = arith.constant 0 : i32
    %c0_i32_0 = arith.constant 0 : i32
    %c0_i32_1 = arith.constant 0 : i32
    return %c0_i32, %c0_i32_0 : i32, i32
  }
  func.func @transform_2(%arg0: i32, %arg1: i32) -> (i32, i32, i32) {
    %c0_i32 = arith.constant 0 : i32
    %c0_i32_0 = arith.constant 0 : i32
    return %arg0, %arg1, %c0_i32 : i32, i32, i32
  }
  func.func @transform_3(%arg0: i32, %arg1: i32) -> (i32, i32, i32, i32) {
    %c0_i32 = arith.constant 0 : i32
    %c0_i32_0 = arith.constant 0 : i32
    %c0_i32_1 = arith.constant 0 : i32
    return %arg0, %arg1, %c0_i32, %c0_i32_0 : i32, i32, i32, i32
  }
  func.func @transform_4(%arg0: i32, %arg1: i32) -> (i32, i32, i32, i32) {
    %c0_i32 = arith.constant 0 : i32
    %c0_i32_0 = arith.constant 0 : i32
    %c0_i32_1 = arith.constant 0 : i32
    return %arg0, %arg1, %c0_i32, %c0_i32_0 : i32, i32, i32, i32
  }
}

</mosaic_0001>

<llo_original>
// kernel: tpu_custom_call.1
$region0: #{tpu_custom_call.1}
  #allocation0 [shape = 'u32[]', space=smem, size = 0x4, offset = 0x4, fixed_abs, tag = 'smem constant byte address 0x4 - core index']
  #allocation1 [shape = 'u32[144,128]{1,0:T(1,128)}', space=vmem, size = 0x12000, scoped, tag = 'internal scratch']
  %s0 = inlined_call_operand.hbm [shape: bf16[2,256,147], index: 0, kind: input, shape index: {}]
  %s1 = inlined_call_operand.hbm [shape: bf16[147,64], index: 1, kind: input, shape index: {}]
  %s2 = inlined_call_operand.hbm [shape: bf16[2,256,64], index: 2, kind: output, shape index: {0}]
  %s3 = inlined_call_operand.hbm [shape: f32[2,1,1,64], index: 3, kind: output, shape index: {1}]
  %s4 = inlined_call_operand.hbm [shape: f32[2,1,1,64], index: 4, kind: output, shape index: {2}]
  %5 = xla_tuple %s2, %s3, %s4
  %s6 = sld [smem:[#allocation0]]
  $region65: #{tpu_custom_call.1} parent=0
    _
  %s8 = ssub.s32 1, %s6
  %s9 = scalar_select 0, %s8, %s6
  $region1: #{tpu_custom_call.1} parent=0
    #allocation2 [shape = 'u8[262144]{0}', space=vmem, size = 0x40000, scoped, tag = 'input window, operand 0']
    #allocation3 [shape = 's32[2]{0}', space=sflag, size = 0x8, scoped, tag = 'scoped memory for tpu_custom_call.1']
    #allocation4 [shape = 's32[2]{0}', space=sflag, size = 0x8, scoped, tag = 'scoped memory for tpu_custom_call.1']
    #allocation5 [shape = 'u8[38912]{0}', space=vmem, size = 0x9800, scoped, tag = 'input window, operand 1, single buffered']
    #allocation6 [shape = 's32[1]{0}', space=sflag, size = 0x4, scoped, tag = 'scoped memory for tpu_custom_call.1']
    #allocation7 [shape = 'u8[131072]{0}', space=vmem, size = 0x20000, scoped, tag = 'output window, operand 0']
    #allocation8 [shape = 'u8[1024]{0}', space=vmem, size = 0x400, scoped, tag = 'output window, operand 1']
    #allocation9 [shape = 's32[2]{0}', space=sflag, size = 0x8, scoped, tag = 'scoped memory for tpu_custom_call.1']
    #allocation10 [shape = 'u8[1024]{0}', space=vmem, size = 0x400, scoped, tag = 'output window, operand 2']
    %10 = vsyncpa [#allocation3], 0
    %s11 = scalar_lea.sflag [#allocation3], 1
    %12 = vsyncpa %s11, 0
    %13 = vsyncpa [#allocation6], 0
    %14 = vsyncpa [#allocation4], 0
    %s15 = scalar_lea.sflag [#allocation4], 1
    %16 = vsyncpa %s15, 0
    %17 = vsyncpa [#allocation9], 0
    %s18 = scalar_lea.sflag [#allocation9], 1
    %19 = vsyncpa %s18, 0
    loop: start=0, step=1, limit=4
    $region2: #{tpu_custom_call.1} parent=1 // loop_pre_header
      _
    $region3: #{tpu_custom_call.1} parent=1 // loop_header
      %s21 = sphi 0, %s25
      %p22 = scmp.ge.s32.totalorder %s21, 4
      %s28 = sphi 0, %s40
      %s29 = sphi 0, %s36
      %s30 = sphi 0, %s28
      %s31 = sphi 0, %s29
      %s32 = sphi 0, %s30
      %s33 = sphi 0, %s31
      %s45 = sphi 0, %s47
      %s48 = sphi 0, %s45
      %s49 = sphi 0, %s48
      %s65 = sphi 0, %s49
      %s69 = sphi 0, %s69
      %s71 = sphi 0, %s69
      %s72 = sphi 0, %s71
      %s86 = sphi 0, %s72
      %s94 = sphi 0, %s96
      %s97 = sphi 0, %s94
      %s98 = sphi 0, %s97
      %s114 = sphi 0, %s98
      %s122 = sphi 0, %s124
      %s125 = sphi 0, %s122
      %s126 = sphi 0, %s125
      %s142 = sphi 0, %s126
      %s150 = sphi 0, %s152
      %s153 = sphi 0, %s150
      %s154 = sphi 0, %s153
      %s170 = sphi 0, %s154
    $region4: #{tpu_custom_call.1} parent=1 // loop_header_branch
      %24 = sbr.rel (%p22) target = $region8
    $region5: #{tpu_custom_call.1} parent=1 // loop_body
      %s26 = ssub.s32 %s21, 1
      %s27 = ssub.s32 %s21, 2
      %s34 = sadd.s32 1, %s29
      %p35 = scmp.ge.s32.totalorder %s34, 1
      %s36 = scalar_select %p35, 0, %s34
      %s37 = sadd.s32 1, %s28
      %s38 = scalar_select %p35, %s37, %s28
      %p39 = scmp.ge.s32.totalorder %s38, 2
      %s40 = scalar_select %p39, 0, %s38
      %s41 = ssub.s32 %s28, %s40
      %s42 = ssub.s32 %s29, %s36
      %s43 = sor.u32 %s41, %s42
      %p44 = scmp.eq.s32.totalorder %s43, 0
      %s46 = sadd.s32 %s45, 1
      %s47 = scalar_select %p44, %s45, %s46
      %p50 = pneg %p44
      %p51 = scmp.eq.s32.totalorder %s21, 1
      %p52 = por %p50, %p51
      %p53 = scmp.ne.s32.totalorder %s45, %s48
      %p54 = scmp.eq.s32.totalorder %s21, 0
      %p55 = por %p53, %p54
      %p56 = scmp.ne.s32.totalorder %s45, %s48
      %p57 = scmp.eq.s32.totalorder %s26, 1
      %p58 = por %p56, %p57
      %p59 = scmp.ne.s32.totalorder %s48, %s49
      %p60 = scmp.eq.s32.totalorder %s26, 0
      %p61 = por %p59, %p60
      %p62 = scmp.ne.s32.totalorder %s48, %s49
      %p63 = scmp.eq.s32.totalorder %s27, 1
      %p64 = por %p62, %p63
      %p66 = scmp.ne.s32.totalorder %s49, %s65
      %p67 = scmp.eq.s32.totalorder %s27, 0
      %p68 = por %p66, %p67
      %s70 = sadd.s32 %s69, 1
      %p73 = scmp.eq.s32.totalorder %s21, 1
      %p74 = scmp.ne.s32.totalorder %s69, %s71
      %p75 = scmp.eq.s32.totalorder %s21, 0
      %p76 = por %p74, %p75
      %p77 = scmp.ne.s32.totalorder %s69, %s71
      %p78 = scmp.eq.s32.totalorder %s26, 1
      %p79 = por %p77, %p78
      %p80 = scmp.ne.s32.totalorder %s71, %s72
      %p81 = scmp.eq.s32.totalorder %s26, 0
      %p82 = por %p80, %p81
      %p83 = scmp.ne.s32.totalorder %s71, %s72
      %p84 = scmp.eq.s32.totalorder %s27, 1
      %p85 = por %p83, %p84
      %p87 = scmp.ne.s32.totalorder %s72, %s86
      %p88 = scmp.eq.s32.totalorder %s27, 0
      %p89 = por %p87, %p88
      %s90 = ssub.s32 %s28, %s40
      %s91 = ssub.s32 %s29, %s36
      %s92 = sor.u32 %s90, %s91
      %p93 = scmp.eq.s32.totalorder %s92, 0
      %s95 = sadd.s32 %s94, 1
      %s96 = scalar_select %p93, %s94, %s95
      %p99 = pneg %p93
      %p100 = scmp.eq.s32.totalorder %s21, 1
      %p101 = por %p99, %p100
      %p102 = scmp.ne.s32.totalorder %s94, %s97
      %p103 = scmp.eq.s32.totalorder %s21, 0
      %p104 = por %p102, %p103
      %p105 = scmp.ne.s32.totalorder %s94, %s97
      %p106 = scmp.eq.s32.totalorder %s26, 1
      %p107 = por %p105, %p106
      %p108 = scmp.ne.s32.totalorder %s97, %s98
      %p109 = scmp.eq.s32.totalorder %s26, 0
      %p110 = por %p108, %p109
      %p111 = scmp.ne.s32.totalorder %s97, %s98
      %p112 = scmp.eq.s32.totalorder %s27, 1
      %p113 = por %p111, %p112
      %p115 = scmp.ne.s32.totalorder %s98, %s114
      %p116 = scmp.eq.s32.totalorder %s27, 0
      %p117 = por %p115, %p116
      %s118 = ssub.s32 %s28, %s40
      %s119 = ssub.s32 %s29, %s36
      %s120 = sor.u32 %s118, %s119
      %p121 = scmp.eq.s32.totalorder %s120, 0
      %s123 = sadd.s32 %s122, 1
      %s124 = scalar_select %p121, %s122, %s123
      %p127 = pneg %p121
      %p128 = scmp.eq.s32.totalorder %s21, 1
      %p129 = por %p127, %p128
      %p130 = scmp.ne.s32.totalorder %s122, %s125
      %p131 = scmp.eq.s32.totalorder %s21, 0
      %p132 = por %p130, %p131
      %p133 = scmp.ne.s32.totalorder %s122, %s125
      %p134 = scmp.eq.s32.totalorder %s26, 1
      %p135 = por %p133, %p134
      %p136 = scmp.ne.s32.totalorder %s125, %s126
      %p137 = scmp.eq.s32.totalorder %s26, 0
      %p138 = por %p136, %p137
      %p139 = scmp.ne.s32.totalorder %s125, %s126
      %p140 = scmp.eq.s32.totalorder %s27, 1
      %p141 = por %p139, %p140
      %p143 = scmp.ne.s32.totalorder %s126, %s142
      %p144 = scmp.eq.s32.totalorder %s27, 0
      %p145 = por %p143, %p144
      %s146 = ssub.s32 %s28, %s40
      %s147 = ssub.s32 %s29, %s36
      %s148 = sor.u32 %s146, %s147
      %p149 = scmp.eq.s32.totalorder %s148, 0
      %s151 = sadd.s32 %s150, 1
      %s152 = scalar_select %p149, %s150, %s151
      %p155 = pneg %p149
      %p156 = scmp.eq.s32.totalorder %s21, 1
      %p157 = por %p155, %p156
      %p158 = scmp.ne.s32.totalorder %s150, %s153
      %p159 = scmp.eq.s32.totalorder %s21, 0
      %p160 = por %p158, %p159
      %p161 = scmp.ne.s32.totalorder %s150, %s153
      %p162 = scmp.eq.s32.totalorder %s26, 1
      %p163 = por %p161, %p162
      %p164 = scmp.ne.s32.totalorder %s153, %s154
      %p165 = scmp.eq.s32.totalorder %s26, 0
      %p166 = por %p164, %p165
      %p167 = scmp.ne.s32.totalorder %s153, %s154
      %p168 = scmp.eq.s32.totalorder %s27, 1
      %p169 = por %p167, %p168
      %p171 = scmp.ne.s32.totalorder %s154, %s170
      %p172 = scmp.eq.s32.totalorder %s27, 0
      %p173 = por %p171, %p172
      %p174 = scmp.le.s32.totalorder 1, %s21
      %p175 = scmp.lt.s32.totalorder %s21, 3
      %p176 = pnand %p174, %p175
      %p177 = pneg %p176
      // Predicated region
      $region9: #{tpu_custom_call.1} parent=5 // pred_check
        _
      $region10: #{tpu_custom_call.1} parent=5 // pred_check_branch
        %179 = sbr.rel (%p176) target = $region12
      $region11: #{tpu_custom_call.1} parent=5 // pred_region
        %s180 = ssub.s32 %s21, 1
        // Predicated region
        $region13: #{tpu_custom_call.1} parent=11 // pred_check
          %p181 = pneg %p82
        $region14: #{tpu_custom_call.1} parent=11 // pred_check_branch
          %183 = sbr.rel (%p181) target = $region16
        $region15: #{tpu_custom_call.1} parent=11 // pred_region
          %s185 = ssub.s32 1216, 1216
          %186 = vsyncadd [#allocation6], %s185
          %s187 = sshll.u32 [#allocation5], 4
          %s188 = int_to_ptr.vmem [resolvable:$true] %s187
          %193 = dma.hbm_to_vmem [thread:$0]  %s1, 1216, %s188, [#allocation6], 64, 64, 4
        $region16: #{tpu_custom_call.1} parent=11 // pred_fallthru
          _
      $region12: #{tpu_custom_call.1} parent=5 // pred_fallthru
        _
      %p194 = scmp.lt.s32.totalorder %s21, 2
      // Predicated region
      $region17: #{tpu_custom_call.1} parent=5 // pred_check
        %p195 = pneg %p194
      $region18: #{tpu_custom_call.1} parent=5 // pred_check_branch
        %197 = sbr.rel (%p195) target = $region20
      $region19: #{tpu_custom_call.1} parent=5 // pred_region
        // Predicated region
        $region21: #{tpu_custom_call.1} parent=19 // pred_check
          %p198 = pneg %p55
        $region22: #{tpu_custom_call.1} parent=19 // pred_check_branch
          %200 = sbr.rel (%p198) target = $region24
        $region23: #{tpu_custom_call.1} parent=19 // pred_region
          %s201 = sand.u32 %s45, 1
          %s202 = scalar_lea.sflag [#allocation3], %s201
          %s203 = sand.u32 %s45, 1
          %s204 = smul.addr %s203, 256
          %s205 = scalar_lea.vmem [#allocation2], %s204
          %s206 = smul.u32 32, %s29
          %s208 = ssub.s32 4096, 4096
          %209 = vsyncadd %s202, %s208
          %s210 = smul.addr %s206, 2
          %s211 = smul.addr %s28, 64
          %s212 = sadd.s32 %s210, %s211
          %s213 = smul.addr %s212, 64
          %s214 = scalar_lea.hbm %s0, %s213
          %s215 = sshll.u32 %s205, 4
          %s216 = int_to_ptr.vmem [resolvable:$true] %s215
          %221 = dma.hbm_to_vmem [thread:$0]  %s214, 4096, %s216, %s202, 128, 128, 8
        $region24: #{tpu_custom_call.1} parent=19 // pred_fallthru
          _
      $region20: #{tpu_custom_call.1} parent=5 // pred_fallthru
        _
      %p222 = scmp.le.s32.totalorder 1, %s21
      %p223 = scmp.lt.s32.totalorder %s21, 3
      %p224 = pnand %p222, %p223
      %p225 = pneg %p224
      // Predicated region
      $region25: #{tpu_custom_call.1} parent=5 // pred_check
        _
      $region26: #{tpu_custom_call.1} parent=5 // pred_check_branch
        %227 = sbr.rel (%p224) target = $region28
      $region27: #{tpu_custom_call.1} parent=5 // pred_region
        %s228 = ssub.s32 %s21, 1
        %s229 = sand.u32 %s48, 1
        %s230 = scalar_lea.sflag [#allocation3], %s229
        %s231 = sand.u32 %s48, 1
        %s232 = smul.addr %s231, 256
        %s233 = scalar_lea.vmem [#allocation2], %s232
        // Predicated region
        $region29: #{tpu_custom_call.1} parent=27 // pred_check
          %p234 = pneg %p61
        $region30: #{tpu_custom_call.1} parent=27 // pred_check_branch
          %236 = sbr.rel (%p234) target = $region32
        $region31: #{tpu_custom_call.1} parent=27 // pred_region
          %237 = dma.done %s230, 4096
        $region32: #{tpu_custom_call.1} parent=27 // pred_fallthru
          _
        // Predicated region
        $region33: #{tpu_custom_call.1} parent=27 // pred_check
          %p238 = pneg %p82
        $region34: #{tpu_custom_call.1} parent=27 // pred_check_branch
          %240 = sbr.rel (%p238) target = $region36
        $region35: #{tpu_custom_call.1} parent=27 // pred_region
          %241 = dma.done [#allocation6], 1216
        $region36: #{tpu_custom_call.1} parent=27 // pred_fallthru
          _
        %s242 = sand.u32 %s48, 1
        %s243 = scalar_lea.sflag [#allocation3], %s242
        %s244 = sand.u32 %s48, 1
        %s245 = smul.addr %s244, 256
        %s246 = scalar_lea.vmem [#allocation2], %s245
        %p247 = pneg %p61
        %p248 = pneg %p58
        %p249 = pneg %p82
        %p250 = pneg %p79
        %p251 = pneg %p110
        %p252 = pneg %p107
        %s253 = sand.u32 %s97, 1
        %s254 = scalar_lea.sflag [#allocation4], %s253
        %s255 = sand.u32 %s97, 1
        %s256 = smul.addr %s255, 128
        %s257 = scalar_lea.vmem [#allocation7], %s256
        %p258 = pneg %p138
        %p259 = pneg %p135
        %s260 = sand.u32 %s26, 1
        %s261 = scalar_lea.sflag [#allocation9], %s260
        %s262 = sand.u32 %s125, 1
        %s263 = scalar_lea.vmem [#allocation8], %s262
        %p264 = pneg %p166
        %p265 = pneg %p163
        %s266 = sand.u32 %s26, 1
        %s267 = scalar_lea.sflag [#allocation9], %s266
        %s268 = sand.u32 %s153, 1
        %s269 = scalar_lea.vmem [#allocation10], %s268
        %s270 = smul.u32 32, %s31
        %s271 = smul.u32 32, %s31
        %v273 = vld [vmem:[%s233] sm:$0xff]
        %v274 = vld [vmem:[%s233 + $0x8] sm:$0xff]
        %v275 = vld [vmem:[%s233 + $0x10] sm:$0xff]
        %v276 = vld [vmem:[%s233 + $0x18] sm:$0xff]
        %v277 = vld [vmem:[%s233 + $0x20] sm:$0xff]
        %v278 = vld [vmem:[%s233 + $0x28] sm:$0xff]
        %v279 = vld [vmem:[%s233 + $0x30] sm:$0xff]
        %v280 = vld [vmem:[%s233 + $0x38] sm:$0xff]
        %v281 = vld [vmem:[%s233 + $0x40] sm:$0xff]
        %v282 = vld [vmem:[%s233 + $0x48] sm:$0xff]
        %v283 = vld [vmem:[%s233 + $0x50] sm:$0xff]
        %v284 = vld [vmem:[%s233 + $0x58] sm:$0xff]
        %v285 = vld [vmem:[%s233 + $0x60] sm:$0xff]
        %v286 = vld [vmem:[%s233 + $0x68] sm:$0xff]
        %v287 = vld [vmem:[%s233 + $0x70] sm:$0xff]
        %v288 = vld [vmem:[%s233 + $0x78] sm:$0xff]
        %v289 = vld [vmem:[%s233 + $0x80] sm:$0xff]
        %v290 = vld [vmem:[%s233 + $0x88] sm:$0xff]
        %v291 = vld [vmem:[%s233 + $0x90] sm:$0xff]
        %v292 = vld [vmem:[%s233 + $0x98] sm:$0xff]
        %v293 = vld [vmem:[%s233 + $0xa0] sm:$0xff]
        %v294 = vld [vmem:[%s233 + $0xa8] sm:$0xff]
        %v295 = vld [vmem:[%s233 + $0xb0] sm:$0xff]
        %v296 = vld [vmem:[%s233 + $0xb8] sm:$0xff]
        %v297 = vld [vmem:[%s233 + $0xc0] sm:$0xff]
        %v298 = vld [vmem:[%s233 + $0xc8] sm:$0xff]
        %v299 = vld [vmem:[%s233 + $0xd0] sm:$0xff]
        %v300 = vld [vmem:[%s233 + $0xd8] sm:$0xff]
        %v301 = vld [vmem:[%s233 + $0xe0] sm:$0xff]
        %v302 = vld [vmem:[%s233 + $0xe8] sm:$0xff]
        %v303 = vld [vmem:[%s233 + $0xf0] sm:$0xff]
        %v304 = vld [vmem:[%s233 + $0xf8] sm:$0xff]
        %v305 = vld [vmem:[#allocation5] sm:$0xf]
        %v306 = vld [vmem:[#allocation5 + $0x4] sm:$0xf]
        %v307 = vld [vmem:[#allocation5 + $0x8] sm:$0xf]
        %v308 = vld [vmem:[#allocation5 + $0xc] sm:$0xf]
        %v309 = vld [vmem:[#allocation5 + $0x10] sm:$0xf]
        %v310 = vld [vmem:[#allocation5 + $0x14] sm:$0xf]
        %v311 = vld [vmem:[#allocation5 + $0x18] sm:$0xf]
        %v312 = vld [vmem:[#allocation5 + $0x1c] sm:$0xf]
        %v313 = vld [vmem:[#allocation5 + $0x20] sm:$0xf]
        %v314 = vld [vmem:[#allocation5 + $0x24] sm:$0xf]
        %v315 = vld [vmem:[#allocation5 + $0x28] sm:$0xf]
        %v316 = vld [vmem:[#allocation5 + $0x2c] sm:$0xf]
        %v317 = vld [vmem:[#allocation5 + $0x30] sm:$0xf]
        %v318 = vld [vmem:[#allocation5 + $0x34] sm:$0xf]
        %v319 = vld [vmem:[#allocation5 + $0x38] sm:$0xf]
        %v320 = vld [vmem:[#allocation5 + $0x3c] sm:$0xf]
        %v321 = vld [vmem:[#allocation5 + $0x40] sm:$0xf]
        %v322 = vld [vmem:[#allocation5 + $0x44] sm:$0xf]
        %v323 = vld [vmem:[#allocation5 + $0x48] sm:$0x3]
        %v356 = vunpack.c.l.b16 %v273
        %v357 = vunpack.c.h.b16 %v273
        %v358 = vunpack.c.l.b16 %v274
        %v359 = vunpack.c.h.b16 %v274
        %v360 = vunpack.c.l.b16 %v275
        %v361 = vunpack.c.h.b16 %v275
        %v362 = vunpack.c.l.b16 %v276
        %v363 = vunpack.c.h.b16 %v276
        %v364 = vunpack.c.l.b16 %v277
        %v365 = vunpack.c.h.b16 %v277
        %v366 = vunpack.c.l.b16 %v278
        %v367 = vunpack.c.h.b16 %v278
        %v368 = vunpack.c.l.b16 %v279
        %v369 = vunpack.c.h.b16 %v279
        %v370 = vunpack.c.l.b16 %v280
        %v371 = vunpack.c.h.b16 %v280
        %v372 = vunpack.c.l.b16 %v281
        %v373 = vunpack.c.h.b16 %v281
        %v374 = vunpack.c.l.b16 %v282
        %v375 = vunpack.c.h.b16 %v282
        %v376 = vunpack.c.l.b16 %v283
        %v377 = vunpack.c.h.b16 %v283
        %v378 = vunpack.c.l.b16 %v284
        %v379 = vunpack.c.h.b16 %v284
        %v380 = vunpack.c.l.b16 %v285
        %v381 = vunpack.c.h.b16 %v285
        %v382 = vunpack.c.l.b16 %v286
        %v383 = vunpack.c.h.b16 %v286
        %v384 = vunpack.c.l.b16 %v287
        %v385 = vunpack.c.h.b16 %v287
        %v386 = vunpack.c.l.b16 %v288
        %v387 = vunpack.c.h.b16 %v288
        %v388 = vunpack.c.l.b16 %v289
        %v389 = vunpack.c.h.b16 %v289
        %v390 = vunpack.c.l.b16 %v290
        %v391 = vunpack.c.h.b16 %v290
        %v392 = vunpack.c.l.b16 %v291
        %v393 = vunpack.c.h.b16 %v291
        %v394 = vunpack.c.l.b16 %v292
        %v395 = vunpack.c.h.b16 %v292
        %v396 = vunpack.c.l.b16 %v293
        %v397 = vunpack.c.h.b16 %v293
        %v398 = vunpack.c.l.b16 %v294
        %v399 = vunpack.c.h.b16 %v294
        %v400 = vunpack.c.l.b16 %v295
        %v401 = vunpack.c.h.b16 %v295
        %v402 = vunpack.c.l.b16 %v296
        %v403 = vunpack.c.h.b16 %v296
        %v404 = vunpack.c.l.b16 %v297
        %v405 = vunpack.c.h.b16 %v297
        %v406 = vunpack.c.l.b16 %v298
        %v407 = vunpack.c.h.b16 %v298
        %v408 = vunpack.c.l.b16 %v299
        %v409 = vunpack.c.h.b16 %v299
        %v410 = vunpack.c.l.b16 %v300
        %v411 = vunpack.c.h.b16 %v300
        %v412 = vunpack.c.l.b16 %v301
        %v413 = vunpack.c.h.b16 %v301
        %v414 = vunpack.c.l.b16 %v302
        %v415 = vunpack.c.h.b16 %v302
        %v416 = vunpack.c.l.b16 %v303
        %v417 = vunpack.c.h.b16 %v303
        %v418 = vunpack.c.l.b16 %v304
        %v419 = vunpack.c.h.b16 %v304
        %v420 = vpack.c.b16 %v358, %v356
        %v421 = vpack.c.b16 %v359, %v357
        %v422 = vpack.c.b16 %v362, %v360
        %v423 = vpack.c.b16 %v363, %v361
        %v424 = vpack.c.b16 %v366, %v364
        %v425 = vpack.c.b16 %v367, %v365
        %v426 = vpack.c.b16 %v370, %v368
        %v427 = vpack.c.b16 %v371, %v369
        %v428 = vpack.c.b16 %v374, %v372
        %v429 = vpack.c.b16 %v375, %v373
        %v430 = vpack.c.b16 %v378, %v376
        %v431 = vpack.c.b16 %v379, %v377
        %v432 = vpack.c.b16 %v382, %v380
        %v433 = vpack.c.b16 %v383, %v381
        %v434 = vpack.c.b16 %v386, %v384
        %v435 = vpack.c.b16 %v387, %v385
        %v436 = vpack.c.b16 %v390, %v388
        %v437 = vpack.c.b16 %v391, %v389
        %v438 = vpack.c.b16 %v394, %v392
        %v439 = vpack.c.b16 %v395, %v393
        %v440 = vpack.c.b16 %v398, %v396
        %v441 = vpack.c.b16 %v399, %v397
        %v442 = vpack.c.b16 %v402, %v400
        %v443 = vpack.c.b16 %v403, %v401
        %v444 = vpack.c.b16 %v406, %v404
        %v445 = vpack.c.b16 %v407, %v405
        %v446 = vpack.c.b16 %v410, %v408
        %v447 = vpack.c.b16 %v411, %v409
        %v448 = vpack.c.b16 %v414, %v412
        %v449 = vpack.c.b16 %v415, %v413
        %v450 = vpack.c.b16 %v418, %v416
        %v451 = vpack.c.b16 %v419, %v417
        %v487 = vunpack.c.l.b16 %v305
        %v488 = vunpack.c.l.b16 %v306
        %v489 = vunpack.c.l.b16 %v307
        %v490 = vunpack.c.l.b16 %v308
        %v491 = vunpack.c.l.b16 %v309
        %v492 = vunpack.c.l.b16 %v310
        %v493 = vunpack.c.l.b16 %v311
        %v494 = vunpack.c.l.b16 %v312
        %v495 = vunpack.c.l.b16 %v313
        %v496 = vunpack.c.l.b16 %v314
        %v497 = vunpack.c.l.b16 %v315
        %v498 = vunpack.c.l.b16 %v316
        %v499 = vunpack.c.l.b16 %v317
        %v500 = vunpack.c.l.b16 %v318
        %v501 = vunpack.c.l.b16 %v319
        %v502 = vunpack.c.l.b16 %v320
        %v503 = vunpack.c.l.b16 %v321
        %v504 = vunpack.c.l.b16 %v322
        %v505 = vunpack.c.l.b16 %v323
        %v506 = vpack.c.b16 %v488, %v487
        %v507 = vpack.c.b16 %v490, %v489
        %v508 = vpack.c.b16 %v492, %v491
        %v509 = vpack.c.b16 %v494, %v493
        %v510 = vpack.c.b16 %v496, %v495
        %v511 = vpack.c.b16 %v498, %v497
        %v512 = vpack.c.b16 %v500, %v499
        %v513 = vpack.c.b16 %v502, %v501
        %v514 = vpack.c.b16 %v504, %v503
        %v515 = vpack.c.b16 %v505, %v505
        %vm525 = vcmask 154624
        %v527 = vsel %vm525, %v421, 0
        %v530 = vsel %vm525, %v423, 0
        %v533 = vsel %vm525, %v425, 0
        %v536 = vsel %vm525, %v427, 0
        %v539 = vsel %vm525, %v429, 0
        %v542 = vsel %vm525, %v431, 0
        %v545 = vsel %vm525, %v433, 0
        %v548 = vsel %vm525, %v435, 0
        %v551 = vsel %vm525, %v437, 0
        %v554 = vsel %vm525, %v439, 0
        %v557 = vsel %vm525, %v441, 0
        %v560 = vsel %vm525, %v443, 0
        %v563 = vsel %vm525, %v445, 0
        %v566 = vsel %vm525, %v447, 0
        %v569 = vsel %vm525, %v449, 0
        %v572 = vsel %vm525, %v451, 0
        %vm574 = vcmask 1040384
        %vm575 = vcmask 1041408
        %v576 = vsel %vm574, 4294967295, 65535
        %v577 = vsel %vm575, %v576, 0
        %v579 = vand.u32 %v515, %v577
        %581 = vmatprep.subr.bf16.mxu0 0
        %582 = vmatpush1.bf16.msra.mxu0 %v506
        %583 = vmatprep.subr.bf16.mxu0 0
        %584 = vmatpush1.bf16.msra.mxu0 %v507
        %585 = vmatprep.subr.bf16.mxu0 0
        %586 = vmatpush1.bf16.msra.mxu0 %v508
        %587 = vmatprep.subr.bf16.mxu0 0
        %588 = vmatpush1.bf16.msra.mxu0 %v509
        %589 = vmatprep.subr.bf16.mxu0 0
        %590 = vmatpush1.bf16.msra.mxu0 %v510
        %591 = vmatprep.subr.bf16.mxu0 0
        %592 = vmatpush1.bf16.msra.mxu0 %v511
        %593 = vmatprep.subr.bf16.mxu0 0
        %594 = vmatpush1.bf16.msra.mxu0 %v512
        %595 = vmatprep.subr.bf16.mxu0 0
        %596 = vmatpush1.bf16.msra.mxu0 %v513
        %597 = vmatprep.subr.bf16.mxu0 0
        %598 = vmatpush1.bf16.msra.mxu0 %v514
        %599 = vmatprep.subr.bf16.mxu0 0
        %600 = vmatpush1.bf16.msra.mxu0 %v579
        %601 = vmatprep.subr.bf16.mxu0 0
        %602 = vmatpush1.bf16.msra.mxu0 0
        %603 = vmatprep.subr.bf16.mxu0 0
        %604 = vmatpush1.bf16.msra.mxu0 0
        %605 = vmatprep.subr.bf16.mxu0 0
        %606 = vmatpush1.bf16.msra.mxu0 0
        %607 = vmatprep.subr.bf16.mxu0 0
        %608 = vmatpush1.bf16.msra.mxu0 0
        %609 = vmatprep.subr.bf16.mxu0 0
        %610 = vmatpush1.bf16.msra.mxu0 0
        %611 = vmatprep.subr.bf16.mxu0 0
        %612 = vmatpush1.bf16.msra.mxu0 0
        %613 = vmatprep.mubr.bf16.mxu0 %v527
        %614 = vmatmul.mubr.bf16.gmra.mrb[0].mxu0 %v420
        %v615 = vpop.f32.mrb[0].mxu0
        %v616 = vadd.f32 0.0, %v615
        %v617 = vpop.f32.mrb[0].mxu0
        %v618 = vpop.f32.mrb[0].mxu0
        %v619 = vadd.f32 0.0, %v618
        %v620 = vpop.f32.mrb[0].mxu0
        %621 = vmatprep.mubr.bf16.mxu0 %v530
        %622 = vmatmul.mubr.bf16.gmra.mrb[0].mxu0 %v422
        %v623 = vpop.f32.mrb[0].mxu0
        %v624 = vadd.f32 0.0, %v623
        %v625 = vpop.f32.mrb[0].mxu0
        %v626 = vpop.f32.mrb[0].mxu0
        %v627 = vadd.f32 0.0, %v626
        %v628 = vpop.f32.mrb[0].mxu0
        %629 = vmatprep.mubr.bf16.mxu0 %v533
        %630 = vmatmul.mubr.bf16.gmra.mrb[0].mxu0 %v424
        %v631 = vpop.f32.mrb[0].mxu0
        %v632 = vadd.f32 0.0, %v631
        %v633 = vpop.f32.mrb[0].mxu0
        %v634 = vpop.f32.mrb[0].mxu0
        %v635 = vadd.f32 0.0, %v634
        %v636 = vpop.f32.mrb[0].mxu0
        %637 = vmatprep.mubr.bf16.mxu0 %v536
        %638 = vmatmul.mubr.bf16.gmra.mrb[0].mxu0 %v426
        %v639 = vpop.f32.mrb[0].mxu0
        %v640 = vadd.f32 0.0, %v639
        %v641 = vpop.f32.mrb[0].mxu0
        %v642 = vpop.f32.mrb[0].mxu0
        %v643 = vadd.f32 0.0, %v642
        %v644 = vpop.f32.mrb[0].mxu0
        %645 = vmatprep.mubr.bf16.mxu0 %v539
        %646 = vmatmul.mubr.bf16.gmra.mrb[0].mxu0 %v428
        %v647 = vpop.f32.mrb[0].mxu0
        %v648 = vadd.f32 0.0, %v647
        %v649 = vpop.f32.mrb[0].mxu0
        %v650 = vpop.f32.mrb[0].mxu0
        %v651 = vadd.f32 0.0, %v650
        %v652 = vpop.f32.mrb[0].mxu0
        %653 = vmatprep.mubr.bf16.mxu0 %v542
        %654 = vmatmul.mubr.bf16.gmra.mrb[0].mxu0 %v430
        %v655 = vpop.f32.mrb[0].mxu0
        %v656 = vadd.f32 0.0, %v655
        %v657 = vpop.f32.mrb[0].mxu0
        %v658 = vpop.f32.mrb[0].mxu0
        %v659 = vadd.f32 0.0, %v658
        %v660 = vpop.f32.mrb[0].mxu0
        %661 = vmatprep.mubr.bf16.mxu0 %v545
        %662 = vmatmul.mubr.bf16.gmra.mrb[0].mxu0 %v432
        %v663 = vpop.f32.mrb[0].mxu0
        %v664 = vadd.f32 0.0, %v663
        %v665 = vpop.f32.mrb[0].mxu0
        %v666 = vpop.f32.mrb[0].mxu0
        %v667 = vadd.f32 0.0, %v666
        %v668 = vpop.f32.mrb[0].mxu0
        %669 = vmatprep.mubr.bf16.mxu0 %v548
        %670 = vmatmul.mubr.bf16.gmra.mrb[0].mxu0 %v434
        %v671 = vpop.f32.mrb[0].mxu0
        %v672 = vadd.f32 0.0, %v671
        %v673 = vpop.f32.mrb[0].mxu0
        %v674 = vpop.f32.mrb[0].mxu0
        %v675 = vadd.f32 0.0, %v674
        %v676 = vpop.f32.mrb[0].mxu0
        %677 = vmatprep.mubr.bf16.mxu0 %v551
        %678 = vmatmul.mubr.bf16.gmra.mrb[0].mxu0 %v436
        %v679 = vpop.f32.mrb[0].mxu0
        %v680 = vadd.f32 0.0, %v679
        %v681 = vpop.f32.mrb[0].mxu0
        %v682 = vpop.f32.mrb[0].mxu0
        %v683 = vadd.f32 0.0, %v682
        %v684 = vpop.f32.mrb[0].mxu0
        %685 = vmatprep.mubr.bf16.mxu0 %v554
        %686 = vmatmul.mubr.bf16.gmra.mrb[0].mxu0 %v438
        %v687 = vpop.f32.mrb[0].mxu0
        %v688 = vadd.f32 0.0, %v687
        %v689 = vpop.f32.mrb[0].mxu0
        %v690 = vpop.f32.mrb[0].mxu0
        %v691 = vadd.f32 0.0, %v690
        %v692 = vpop.f32.mrb[0].mxu0
        %693 = vmatprep.mubr.bf16.mxu0 %v557
        %694 = vmatmul.mubr.bf16.gmra.mrb[0].mxu0 %v440
        %v695 = vpop.f32.mrb[0].mxu0
        %v696 = vadd.f32 0.0, %v695
        %v697 = vpop.f32.mrb[0].mxu0
        %v698 = vpop.f32.mrb[0].mxu0
        %v699 = vadd.f32 0.0, %v698
        %v700 = vpop.f32.mrb[0].mxu0
        %701 = vmatprep.mubr.bf16.mxu0 %v560
        %702 = vmatmul.mubr.bf16.gmra.mrb[0].mxu0 %v442
        %v703 = vpop.f32.mrb[0].mxu0
        %v704 = vadd.f32 0.0, %v703
        %v705 = vpop.f32.mrb[0].mxu0
        %v706 = vpop.f32.mrb[0].mxu0
        %v707 = vadd.f32 0.0, %v706
        %v708 = vpop.f32.mrb[0].mxu0
        %709 = vmatprep.mubr.bf16.mxu0 %v563
        %710 = vmatmul.mubr.bf16.gmra.mrb[0].mxu0 %v444
        %v711 = vpop.f32.mrb[0].mxu0
        %v712 = vadd.f32 0.0, %v711
        %v713 = vpop.f32.mrb[0].mxu0
        %v714 = vpop.f32.mrb[0].mxu0
        %v715 = vadd.f32 0.0, %v714
        %v716 = vpop.f32.mrb[0].mxu0
        %717 = vmatprep.mubr.bf16.mxu0 %v566
        %718 = vmatmul.mubr.bf16.gmra.mrb[0].mxu0 %v446
        %v719 = vpop.f32.mrb[0].mxu0
        %v720 = vadd.f32 0.0, %v719
        %v721 = vpop.f32.mrb[0].mxu0
        %v722 = vpop.f32.mrb[0].mxu0
        %v723 = vadd.f32 0.0, %v722
        %v724 = vpop.f32.mrb[0].mxu0
        %725 = vmatprep.mubr.bf16.mxu0 %v569
        %726 = vmatmul.mubr.bf16.gmra.mrb[0].mxu0 %v448
        %v727 = vpop.f32.mrb[0].mxu0
        %v728 = vadd.f32 0.0, %v727
        %v729 = vpop.f32.mrb[0].mxu0
        %v730 = vpop.f32.mrb[0].mxu0
        %v731 = vadd.f32 0.0, %v730
        %v732 = vpop.f32.mrb[0].mxu0
        %733 = vmatprep.mubr.bf16.mxu0 %v572
        %734 = vmatmul.mubr.bf16.gmra.mrb[0].mxu0 %v450
        %v735 = vpop.f32.mrb[0].mxu0
        %v736 = vadd.f32 0.0, %v735
        %v737 = vpop.f32.mrb[0].mxu0
        %v738 = vpop.f32.mrb[0].mxu0
        %v739 = vadd.f32 0.0, %v738
        %v740 = vpop.f32.mrb[0].mxu0
        %741 = vdwg.mxu0
        %v742 = vpack.c.bf16 %v619, %v616
        %v743 = vpack.c.bf16 %v627, %v624
        %v744 = vpack.c.bf16 %v635, %v632
        %v745 = vpack.c.bf16 %v643, %v640
        %v746 = vpack.c.bf16 %v651, %v648
        %v747 = vpack.c.bf16 %v659, %v656
        %v748 = vpack.c.bf16 %v667, %v664
        %v749 = vpack.c.bf16 %v675, %v672
        %v750 = vpack.c.bf16 %v683, %v680
        %v751 = vpack.c.bf16 %v691, %v688
        %v752 = vpack.c.bf16 %v699, %v696
        %v753 = vpack.c.bf16 %v707, %v704
        %v754 = vpack.c.bf16 %v715, %v712
        %v755 = vpack.c.bf16 %v723, %v720
        %v756 = vpack.c.bf16 %v731, %v728
        %v757 = vpack.c.bf16 %v739, %v736
        %v774 = vunpack.c.l.b16 %v742
        %v775 = vunpack.c.h.b16 %v742
        %v776 = vunpack.c.l.b16 %v743
        %v777 = vunpack.c.h.b16 %v743
        %v778 = vunpack.c.l.b16 %v744
        %v779 = vunpack.c.h.b16 %v744
        %v780 = vunpack.c.l.b16 %v745
        %v781 = vunpack.c.h.b16 %v745
        %v782 = vunpack.c.l.b16 %v746
        %v783 = vunpack.c.h.b16 %v746
        %v784 = vunpack.c.l.b16 %v747
        %v785 = vunpack.c.h.b16 %v747
        %v786 = vunpack.c.l.b16 %v748
        %v787 = vunpack.c.h.b16 %v748
        %v788 = vunpack.c.l.b16 %v749
        %v789 = vunpack.c.h.b16 %v749
        %v790 = vunpack.c.l.b16 %v750
        %v791 = vunpack.c.h.b16 %v750
        %v792 = vunpack.c.l.b16 %v751
        %v793 = vunpack.c.h.b16 %v751
        %v794 = vunpack.c.l.b16 %v752
        %v795 = vunpack.c.h.b16 %v752
        %v796 = vunpack.c.l.b16 %v753
        %v797 = vunpack.c.h.b16 %v753
        %v798 = vunpack.c.l.b16 %v754
        %v799 = vunpack.c.h.b16 %v754
        %v800 = vunpack.c.l.b16 %v755
        %v801 = vunpack.c.h.b16 %v755
        %v802 = vunpack.c.l.b16 %v756
        %v803 = vunpack.c.h.b16 %v756
        %v804 = vunpack.c.l.b16 %v757
        %v805 = vunpack.c.h.b16 %v757
        %v806 = vpack.c.b16 %v774, %v774
        %v807 = vpack.c.b16 %v775, %v775
        %v808 = vpack.c.b16 %v776, %v776
        %v809 = vpack.c.b16 %v777, %v777
        %v810 = vpack.c.b16 %v778, %v778
        %v811 = vpack.c.b16 %v779, %v779
        %v812 = vpack.c.b16 %v780, %v780
        %v813 = vpack.c.b16 %v781, %v781
        %v814 = vpack.c.b16 %v782, %v782
        %v815 = vpack.c.b16 %v783, %v783
        %v816 = vpack.c.b16 %v784, %v784
        %v817 = vpack.c.b16 %v785, %v785
        %v818 = vpack.c.b16 %v786, %v786
        %v819 = vpack.c.b16 %v787, %v787
        %v820 = vpack.c.b16 %v788, %v788
        %v821 = vpack.c.b16 %v789, %v789
        %v822 = vpack.c.b16 %v790, %v790
        %v823 = vpack.c.b16 %v791, %v791
        %v824 = vpack.c.b16 %v792, %v792
        %v825 = vpack.c.b16 %v793, %v793
        %v826 = vpack.c.b16 %v794, %v794
        %v827 = vpack.c.b16 %v795, %v795
        %v828 = vpack.c.b16 %v796, %v796
        %v829 = vpack.c.b16 %v797, %v797
        %v830 = vpack.c.b16 %v798, %v798
        %v831 = vpack.c.b16 %v799, %v799
        %v832 = vpack.c.b16 %v800, %v800
        %v833 = vpack.c.b16 %v801, %v801
        %v834 = vpack.c.b16 %v802, %v802
        %v835 = vpack.c.b16 %v803, %v803
        %v836 = vpack.c.b16 %v804, %v804
        %v837 = vpack.c.b16 %v805, %v805
        %vm870 = vcmask 519168
        %871 = vst.msk [vmem:[%s257] sm:$0xf] %vm870, %v806
        %872 = vst.msk [vmem:[%s257 + $0x4] sm:$0xf] %vm870, %v807
        %873 = vst.msk [vmem:[%s257 + $0x8] sm:$0xf] %vm870, %v808
        %874 = vst.msk [vmem:[%s257 + $0xc] sm:$0xf] %vm870, %v809
        %875 = vst.msk [vmem:[%s257 + $0x10] sm:$0xf] %vm870, %v810
        %876 = vst.msk [vmem:[%s257 + $0x14] sm:$0xf] %vm870, %v811
        %877 = vst.msk [vmem:[%s257 + $0x18] sm:$0xf] %vm870, %v812
        %878 = vst.msk [vmem:[%s257 + $0x1c] sm:$0xf] %vm870, %v813
        %879 = vst.msk [vmem:[%s257 + $0x20] sm:$0xf] %vm870, %v814
        %880 = vst.msk [vmem:[%s257 + $0x24] sm:$0xf] %vm870, %v815
        %881 = vst.msk [vmem:[%s257 + $0x28] sm:$0xf] %vm870, %v816
        %882 = vst.msk [vmem:[%s257 + $0x2c] sm:$0xf] %vm870, %v817
        %883 = vst.msk [vmem:[%s257 + $0x30] sm:$0xf] %vm870, %v818
        %884 = vst.msk [vmem:[%s257 + $0x34] sm:$0xf] %vm870, %v819
        %885 = vst.msk [vmem:[%s257 + $0x38] sm:$0xf] %vm870, %v820
        %886 = vst.msk [vmem:[%s257 + $0x3c] sm:$0xf] %vm870, %v821
        %887 = vst.msk [vmem:[%s257 + $0x40] sm:$0xf] %vm870, %v822
        %888 = vst.msk [vmem:[%s257 + $0x44] sm:$0xf] %vm870, %v823
        %889 = vst.msk [vmem:[%s257 + $0x48] sm:$0xf] %vm870, %v824
        %890 = vst.msk [vmem:[%s257 + $0x4c] sm:$0xf] %vm870, %v825
        %891 = vst.msk [vmem:[%s257 + $0x50] sm:$0xf] %vm870, %v826
        %892 = vst.msk [vmem:[%s257 + $0x54] sm:$0xf] %vm870, %v827
        %893 = vst.msk [vmem:[%s257 + $0x58] sm:$0xf] %vm870, %v828
        %894 = vst.msk [vmem:[%s257 + $0x5c] sm:$0xf] %vm870, %v829
        %895 = vst.msk [vmem:[%s257 + $0x60] sm:$0xf] %vm870, %v830
        %896 = vst.msk [vmem:[%s257 + $0x64] sm:$0xf] %vm870, %v831
        %897 = vst.msk [vmem:[%s257 + $0x68] sm:$0xf] %vm870, %v832
        %898 = vst.msk [vmem:[%s257 + $0x6c] sm:$0xf] %vm870, %v833
        %899 = vst.msk [vmem:[%s257 + $0x70] sm:$0xf] %vm870, %v834
        %900 = vst.msk [vmem:[%s257 + $0x74] sm:$0xf] %vm870, %v835
        %901 = vst.msk [vmem:[%s257 + $0x78] sm:$0xf] %vm870, %v836
        %902 = vst.msk [vmem:[%s257 + $0x7c] sm:$0xf] %vm870, %v837
        %v903 = vunpack.c.l.bf16 %v742
        %v904 = vunpack.c.h.bf16 %v742
        %v905 = vunpack.c.l.bf16 %v743
        %v906 = vunpack.c.h.bf16 %v743
        %v907 = vunpack.c.l.bf16 %v744
        %v908 = vunpack.c.h.bf16 %v744
        %v909 = vunpack.c.l.bf16 %v745
        %v910 = vunpack.c.h.bf16 %v745
        %v911 = vunpack.c.l.bf16 %v746
        %v912 = vunpack.c.h.bf16 %v746
        %v913 = vunpack.c.l.bf16 %v747
        %v914 = vunpack.c.h.bf16 %v747
        %v915 = vunpack.c.l.bf16 %v748
        %v916 = vunpack.c.h.bf16 %v748
        %v917 = vunpack.c.l.bf16 %v749
        %v918 = vunpack.c.h.bf16 %v749
        %v919 = vunpack.c.l.bf16 %v750
        %v920 = vunpack.c.h.bf16 %v750
        %v921 = vunpack.c.l.bf16 %v751
        %v922 = vunpack.c.h.bf16 %v751
        %v923 = vunpack.c.l.bf16 %v752
        %v924 = vunpack.c.h.bf16 %v752
        %v925 = vunpack.c.l.bf16 %v753
        %v926 = vunpack.c.h.bf16 %v753
        %v927 = vunpack.c.l.bf16 %v754
        %v928 = vunpack.c.h.bf16 %v754
        %v929 = vunpack.c.l.bf16 %v755
        %v930 = vunpack.c.h.bf16 %v755
        %v931 = vunpack.c.l.bf16 %v756
        %v932 = vunpack.c.h.bf16 %v756
        %v933 = vunpack.c.l.bf16 %v757
        %v934 = vunpack.c.h.bf16 %v757
        %vm935 = vcmask 523264
        %v936 = vsel %vm935, %v903, 0.0
        %v937 = vsel %vm935, %v904, 0.0
        %v938 = vadd.f32 %v936, %v937
        %v939 = vsel %vm935, %v905, 0.0
        %v940 = vadd.f32 %v938, %v939
        %v941 = vsel %vm935, %v906, 0.0
        %v942 = vadd.f32 %v940, %v941
        %v943 = vsel %vm935, %v907, 0.0
        %v944 = vadd.f32 %v942, %v943
        %v945 = vsel %vm935, %v908, 0.0
        %v946 = vadd.f32 %v944, %v945
        %v947 = vsel %vm935, %v909, 0.0
        %v948 = vadd.f32 %v946, %v947
        %v949 = vsel %vm935, %v910, 0.0
        %v950 = vadd.f32 %v948, %v949
        %v951 = vsel %vm935, %v911, 0.0
        %v952 = vadd.f32 %v950, %v951
        %v953 = vsel %vm935, %v912, 0.0
        %v954 = vadd.f32 %v952, %v953
        %v955 = vsel %vm935, %v913, 0.0
        %v956 = vadd.f32 %v954, %v955
        %v957 = vsel %vm935, %v914, 0.0
        %v958 = vadd.f32 %v956, %v957
        %v959 = vsel %vm935, %v915, 0.0
        %v960 = vadd.f32 %v958, %v959
        %v961 = vsel %vm935, %v916, 0.0
        %v962 = vadd.f32 %v960, %v961
        %v963 = vsel %vm935, %v917, 0.0
        %v964 = vadd.f32 %v962, %v963
        %v965 = vsel %vm935, %v918, 0.0
        %v966 = vadd.f32 %v964, %v965
        %v967 = vsel %vm935, %v919, 0.0
        %v968 = vadd.f32 %v966, %v967
        %v969 = vsel %vm935, %v920, 0.0
        %v970 = vadd.f32 %v968, %v969
        %v971 = vsel %vm935, %v921, 0.0
        %v972 = vadd.f32 %v970, %v971
        %v973 = vsel %vm935, %v922, 0.0
        %v974 = vadd.f32 %v972, %v973
        %v975 = vsel %vm935, %v923, 0.0
        %v976 = vadd.f32 %v974, %v975
        %v977 = vsel %vm935, %v924, 0.0
        %v978 = vadd.f32 %v976, %v977
        %v979 = vsel %vm935, %v925, 0.0
        %v980 = vadd.f32 %v978, %v979
        %v981 = vsel %vm935, %v926, 0.0
        %v982 = vadd.f32 %v980, %v981
        %v983 = vsel %vm935, %v927, 0.0
        %v984 = vadd.f32 %v982, %v983
        %v985 = vsel %vm935, %v928, 0.0
        %v986 = vadd.f32 %v984, %v985
        %v987 = vsel %vm935, %v929, 0.0
        %v988 = vadd.f32 %v986, %v987
        %v989 = vsel %vm935, %v930, 0.0
        %v990 = vadd.f32 %v988, %v989
        %v991 = vsel %vm935, %v931, 0.0
        %v992 = vadd.f32 %v990, %v991
        %v993 = vsel %vm935, %v932, 0.0
        %v994 = vadd.f32 %v992, %v993
        %v995 = vsel %vm935, %v933, 0.0
        %v996 = vadd.f32 %v994, %v995
        %v997 = vsel %vm935, %v934, 0.0
        %v998 = vadd.f32 %v996, %v997
        %v999 = vrot.slane %v998, 4
        %v1000 = vadd.f32 %v998, %v999
        %v1001 = vrot.slane %v1000, 2
        %v1002 = vadd.f32 %v1000, %v1001
        %v1003 = vrot.slane %v1002, 1
        %v1004 = vadd.f32 %v1002, %v1003
        %vm1005 = vcmask 516096
        %1006 = vst.msk [vmem:[%s263] sm:$0x1] %vm1005, %v1004
        %v1007 = vmul.f32 %v903, %v903
        %v1008 = vmul.f32 %v904, %v904
        %v1009 = vmul.f32 %v905, %v905
        %v1010 = vmul.f32 %v906, %v906
        %v1011 = vmul.f32 %v907, %v907
        %v1012 = vmul.f32 %v908, %v908
        %v1013 = vmul.f32 %v909, %v909
        %v1014 = vmul.f32 %v910, %v910
        %v1015 = vmul.f32 %v911, %v911
        %v1016 = vmul.f32 %v912, %v912
        %v1017 = vmul.f32 %v913, %v913
        %v1018 = vmul.f32 %v914, %v914
        %v1019 = vmul.f32 %v915, %v915
        %v1020 = vmul.f32 %v916, %v916
        %v1021 = vmul.f32 %v917, %v917
        %v1022 = vmul.f32 %v918, %v918
        %v1023 = vmul.f32 %v919, %v919
        %v1024 = vmul.f32 %v920, %v920
        %v1025 = vmul.f32 %v921, %v921
        %v1026 = vmul.f32 %v922, %v922
        %v1027 = vmul.f32 %v923, %v923
        %v1028 = vmul.f32 %v924, %v924
        %v1029 = vmul.f32 %v925, %v925
        %v1030 = vmul.f32 %v926, %v926
        %v1031 = vmul.f32 %v927, %v927
        %v1032 = vmul.f32 %v928, %v928
        %v1033 = vmul.f32 %v929, %v929
        %v1034 = vmul.f32 %v930, %v930
        %v1035 = vmul.f32 %v931, %v931
        %v1036 = vmul.f32 %v932, %v932
        %v1037 = vmul.f32 %v933, %v933
        %v1038 = vmul.f32 %v934, %v934
        %v1039 = vsel %vm935, %v1007, 0.0
        %v1040 = vsel %vm935, %v1008, 0.0
        %v1041 = vadd.f32 %v1039, %v1040
        %v1042 = vsel %vm935, %v1009, 0.0
        %v1043 = vadd.f32 %v1041, %v1042
        %v1044 = vsel %vm935, %v1010, 0.0
        %v1045 = vadd.f32 %v1043, %v1044
        %v1046 = vsel %vm935, %v1011, 0.0
        %v1047 = vadd.f32 %v1045, %v1046
        %v1048 = vsel %vm935, %v1012, 0.0
        %v1049 = vadd.f32 %v1047, %v1048
        %v1050 = vsel %vm935, %v1013, 0.0
        %v1051 = vadd.f32 %v1049, %v1050
        %v1052 = vsel %vm935, %v1014, 0.0
        %v1053 = vadd.f32 %v1051, %v1052
        %v1054 = vsel %vm935, %v1015, 0.0
        %v1055 = vadd.f32 %v1053, %v1054
        %v1056 = vsel %vm935, %v1016, 0.0
        %v1057 = vadd.f32 %v1055, %v1056
        %v1058 = vsel %vm935, %v1017, 0.0
        %v1059 = vadd.f32 %v1057, %v1058
        %v1060 = vsel %vm935, %v1018, 0.0
        %v1061 = vadd.f32 %v1059, %v1060
        %v1062 = vsel %vm935, %v1019, 0.0
        %v1063 = vadd.f32 %v1061, %v1062
        %v1064 = vsel %vm935, %v1020, 0.0
        %v1065 = vadd.f32 %v1063, %v1064
        %v1066 = vsel %vm935, %v1021, 0.0
        %v1067 = vadd.f32 %v1065, %v1066
        %v1068 = vsel %vm935, %v1022, 0.0
        %v1069 = vadd.f32 %v1067, %v1068
        %v1070 = vsel %vm935, %v1023, 0.0
        %v1071 = vadd.f32 %v1069, %v1070
        %v1072 = vsel %vm935, %v1024, 0.0
        %v1073 = vadd.f32 %v1071, %v1072
        %v1074 = vsel %vm935, %v1025, 0.0
        %v1075 = vadd.f32 %v1073, %v1074
        %v1076 = vsel %vm935, %v1026, 0.0
        %v1077 = vadd.f32 %v1075, %v1076
        %v1078 = vsel %vm935, %v1027, 0.0
        %v1079 = vadd.f32 %v1077, %v1078
        %v1080 = vsel %vm935, %v1028, 0.0
        %v1081 = vadd.f32 %v1079, %v1080
        %v1082 = vsel %vm935, %v1029, 0.0
        %v1083 = vadd.f32 %v1081, %v1082
        %v1084 = vsel %vm935, %v1030, 0.0
        %v1085 = vadd.f32 %v1083, %v1084
        %v1086 = vsel %vm935, %v1031, 0.0
        %v1087 = vadd.f32 %v1085, %v1086
        %v1088 = vsel %vm935, %v1032, 0.0
        %v1089 = vadd.f32 %v1087, %v1088
        %v1090 = vsel %vm935, %v1033, 0.0
        %v1091 = vadd.f32 %v1089, %v1090
        %v1092 = vsel %vm935, %v1034, 0.0
        %v1093 = vadd.f32 %v1091, %v1092
        %v1094 = vsel %vm935, %v1035, 0.0
        %v1095 = vadd.f32 %v1093, %v1094
        %v1096 = vsel %vm935, %v1036, 0.0
        %v1097 = vadd.f32 %v1095, %v1096
        %v1098 = vsel %vm935, %v1037, 0.0
        %v1099 = vadd.f32 %v1097, %v1098
        %v1100 = vsel %vm935, %v1038, 0.0
        %v1101 = vadd.f32 %v1099, %v1100
        %v1102 = vrot.slane %v1101, 4
        %v1103 = vadd.f32 %v1101, %v1102
        %v1104 = vrot.slane %v1103, 2
        %v1105 = vadd.f32 %v1103, %v1104
        %v1106 = vrot.slane %v1105, 1
        %v1107 = vadd.f32 %v1105, %v1106
        %1108 = vst.msk [vmem:[%s269] sm:$0x1] %vm1005, %v1107
        %s1109 = sand.u32 %s97, 1
        %s1110 = scalar_lea.sflag [#allocation4], %s1109
        %s1111 = sand.u32 %s97, 1
        %s1112 = smul.addr %s1111, 128
        %s1113 = scalar_lea.vmem [#allocation7], %s1112
        %s1114 = sand.u32 %s26, 1
        %s1115 = scalar_lea.sflag [#allocation9], %s1114
        %s1116 = sand.u32 %s125, 1
        %s1117 = scalar_lea.vmem [#allocation8], %s1116
        %s1118 = sand.u32 %s26, 1
        %s1119 = scalar_lea.sflag [#allocation9], %s1118
        %s1120 = sand.u32 %s153, 1
        %s1121 = scalar_lea.vmem [#allocation10], %s1120
        // Predicated region
        $region37: #{tpu_custom_call.1} parent=27 // pred_check
          %p1122 = pneg %p107
        $region38: #{tpu_custom_call.1} parent=27 // pred_check_branch
          %1124 = sbr.rel (%p1122) target = $region40
        $region39: #{tpu_custom_call.1} parent=27 // pred_region
          %s1125 = smul.u32 32, %s31
          %s1127 = ssub.s32 2048, 2048
          %1128 = vsyncadd %s1110, %s1127
          %s1129 = smul.addr %s30, 32
          %s1130 = sadd.s32 %s1125, %s1129
          %s1131 = smul.addr %s1130, 64
          %s1132 = scalar_lea.hbm %s2, %s1131
          %s1133 = sshll.u32 %s1113, 4
          %s1134 = int_to_ptr.vmem [resolvable:$true] %s1133
          %1139 = dma.vmem_to_hbm [thread:$0]  %s1134, 2048, %s1132, %s1110, 64, 64, 4
        $region40: #{tpu_custom_call.1} parent=27 // pred_fallthru
          _
        // Predicated region
        $region41: #{tpu_custom_call.1} parent=27 // pred_check
          %p1140 = pneg %p135
        $region42: #{tpu_custom_call.1} parent=27 // pred_check_branch
          %1142 = sbr.rel (%p1140) target = $region44
        $region43: #{tpu_custom_call.1} parent=27 // pred_region
          %s1144 = ssub.s32 16, 16
          %1145 = vsyncadd %s1115, %s1144
          %s1146 = sadd.s32 %s31, %s30
          %s1147 = smul.addr %s1146, 16
          %s1148 = scalar_lea.hbm %s3, %s1147
          %s1150 = sshll.u32 %s1117, 4
          %s1151 = int_to_ptr.vmem [resolvable:$true] %s1150
          %1153 = dma.vmem_to_hbm [thread:$0]  %s1151, 16, %s1148, %s1115
        $region44: #{tpu_custom_call.1} parent=27 // pred_fallthru
          _
        // Predicated region
        $region45: #{tpu_custom_call.1} parent=27 // pred_check
          %p1154 = pneg %p163
        $region46: #{tpu_custom_call.1} parent=27 // pred_check_branch
          %1156 = sbr.rel (%p1154) target = $region48
        $region47: #{tpu_custom_call.1} parent=27 // pred_region
          %s1158 = ssub.s32 16, 16
          %1159 = vsyncadd %s1119, %s1158
          %s1160 = sadd.s32 %s31, %s30
          %s1161 = smul.addr %s1160, 16
          %s1162 = scalar_lea.hbm %s4, %s1161
          %s1164 = sshll.u32 %s1121, 4
          %s1165 = int_to_ptr.vmem [resolvable:$true] %s1164
          %1167 = dma.vmem_to_hbm [thread:$0]  %s1165, 16, %s1162, %s1119
        $region48: #{tpu_custom_call.1} parent=27 // pred_fallthru
          _
      $region28: #{tpu_custom_call.1} parent=5 // pred_fallthru
        _
      %p1168 = scmp.le.s32.totalorder 2, %s21
      // Predicated region
      $region49: #{tpu_custom_call.1} parent=5 // pred_check
        %p1169 = pneg %p1168
      $region50: #{tpu_custom_call.1} parent=5 // pred_check_branch
        %1171 = sbr.rel (%p1169) target = $region52
      $region51: #{tpu_custom_call.1} parent=5 // pred_region
        %s1172 = ssub.s32 %s21, 2
        // Predicated region
        $region53: #{tpu_custom_call.1} parent=51 // pred_check
          %p1173 = pneg %p113
        $region54: #{tpu_custom_call.1} parent=51 // pred_check_branch
          %1175 = sbr.rel (%p1173) target = $region56
        $region55: #{tpu_custom_call.1} parent=51 // pred_region
          %s1176 = sand.u32 %s98, 1
          %s1177 = scalar_lea.sflag [#allocation4], %s1176
          %s1178 = sand.u32 %s98, 1
          %s1179 = smul.addr %s1178, 128
          %s1180 = scalar_lea.vmem [#allocation7], %s1179
          %1181 = dma.done %s1177, 2048
        $region56: #{tpu_custom_call.1} parent=51 // pred_fallthru
          _
        // Predicated region
        $region57: #{tpu_custom_call.1} parent=51 // pred_check
          %p1182 = pneg %p141
        $region58: #{tpu_custom_call.1} parent=51 // pred_check_branch
          %1184 = sbr.rel (%p1182) target = $region60
        $region59: #{tpu_custom_call.1} parent=51 // pred_region
          %s1185 = sand.u32 %s27, 1
          %s1186 = scalar_lea.sflag [#allocation9], %s1185
          %s1187 = sand.u32 %s126, 1
          %s1188 = scalar_lea.vmem [#allocation8], %s1187
          %1189 = dma.done %s1186, 16
        $region60: #{tpu_custom_call.1} parent=51 // pred_fallthru
          _
        // Predicated region
        $region61: #{tpu_custom_call.1} parent=51 // pred_check
          %p1190 = pneg %p169
        $region62: #{tpu_custom_call.1} parent=51 // pred_check_branch
          %1192 = sbr.rel (%p1190) target = $region64
        $region63: #{tpu_custom_call.1} parent=51 // pred_region
          %s1193 = sand.u32 %s27, 1
          %s1194 = scalar_lea.sflag [#allocation9], %s1193
          %s1195 = sand.u32 %s154, 1
          %s1196 = scalar_lea.vmem [#allocation10], %s1195
          %1197 = dma.done %s1194, 16
        $region64: #{tpu_custom_call.1} parent=51 // pred_fallthru
          _
      $region52: #{tpu_custom_call.1} parent=5 // pred_fallthru
        _
    $region6: #{tpu_custom_call.1} parent=1 // loop_footer
      %s25 = sadd.s32 1, %s21
    $region7: #{tpu_custom_call.1} parent=1 // loop_footer_branch
      %20 = sbr.rel target = $region3
    $region8: #{tpu_custom_call.1} parent=1 // loop_exit
      _
    %1198 = vsyncpa [#allocation3], 1
    %s1199 = scalar_lea.sflag [#allocation3], 1
    %1200 = vsyncpa %s1199, 1
    %1201 = vsyncpa [#allocation6], 1
    %1202 = vsyncpa [#allocation4], 1
    %s1203 = scalar_lea.sflag [#allocation4], 1
    %1204 = vsyncpa %s1203, 1
    %1205 = vsyncpa [#allocation9], 1
    %s1206 = scalar_lea.sflag [#allocation9], 1
    %1207 = vsyncpa %s1206, 1

</llo_original>
